<compile_context>
chip_gen: v5e
topology: v5e:2x2
jax: 0.10.0
libtpu: 0.0.40
codegen_flags: <defaults>
</compile_context>

<pallas_src>
import jax
import jax.numpy as jnp
from jax import lax
from jax.experimental import pallas as pl
from jax.experimental.pallas import tpu as pltpu

# Full f32 matmul accuracy for both the kernel's traced dots and the reference
# (TPU default truncates f32 matmul operands to bf16, which the softmax amplifies).
jax.config.update("jax_default_matmul_precision", "highest")


# ---------------------------------------------------------------------------
# One (batch row, head) grid step: this head's attention plus its slice of the
# output projection, accumulated into a per-row f32 VMEM scratch.
# ---------------------------------------------------------------------------
def _mha_kernel(x_ref, wq_ref, wk_ref, wv_ref, wp_ref, b_ref, o_ref, acc_ref):
    h = pl.program_id(1)
    num_heads = pl.num_programs(1)

    # Initialize the per-row accumulator with the projection bias.
    @pl.when(h == 0)
    def _():
        acc_ref[...] = jnp.broadcast_to(
            b_ref[...].astype(jnp.float32), acc_ref.shape)

    x = x_ref[0]                      # (T, E), input dtype
    in_dtype = x.dtype

    # Per-head projections: operands in input dtype, f32 accumulation on the MXU.
    q = jnp.dot(x, wq_ref[0], preferred_element_type=jnp.float32).astype(in_dtype)
    k = jnp.dot(x, wk_ref[0], preferred_element_type=jnp.float32).astype(in_dtype)
    v = jnp.dot(x, wv_ref[0], preferred_element_type=jnp.float32).astype(in_dtype)

    # scores = q @ k^T (1/sqrt(D) already folded into wq); contract last dims so
    # no transpose is materialized.
    s = lax.dot_general(q, k, (((1,), (1,)), ((), ())),
                        preferred_element_type=jnp.float32)          # (T, T) f32
    s = s - jnp.max(s, axis=-1, keepdims=True)                       # stable softmax
    e = jnp.exp(s)
    p = e * (1.0 / jnp.sum(e, axis=-1, keepdims=True))               # exact recip

    head_out = jnp.dot(p.astype(in_dtype), v,
                       preferred_element_type=jnp.float32)           # (T, D) f32

    # Fold this head's slice of the output projection into the accumulator.
    wp_h = wp_ref[0]                                                 # (D, E)
    acc_ref[...] += jnp.dot(head_out.astype(wp_h.dtype), wp_h,
                            preferred_element_type=jnp.float32)

    @pl.when(h == num_heads - 1)
    def _():
        o_ref[0] = acc_ref[...].astype(o_ref.dtype)                  # lane-dense (T, E)


def multi_head_attention(x, wq, wk, wv, w_proj, b_proj):
    """x: (B, T, E); wq/wk/wv: (H, E, D); w_proj: (E, E) torch (out, in); b_proj: (E,)."""
    B, T, E = x.shape
    H, _, D = wq.shape
    assert H * D == E, "num_heads * head_size must equal n_embd for the projection"

    dtype = x.dtype
    scale = 1.0 / (D ** 0.5)

    # Fold the attention scale into the Q weights (zero in-kernel cost).
    wq_s = (wq * scale).astype(dtype)                                # (H, E, D)
    wk_s = wk.astype(dtype)
    wv_s = wv.astype(dtype)

    # Per-head slices of the output projection, pre-transposed once to (in, out):
    #   out = concat_h(head_h) @ w_proj.T == sum_h head_h @ w_proj.T[h*D:(h+1)*D, :]
    wp_heads = jnp.transpose(w_proj).reshape(H, D, E).astype(dtype)  # (H, D, E)
    b2 = b_proj.reshape(1, E).astype(jnp.float32)

    itemsize = jnp.dtype(dtype).itemsize
    # Explicit VMEM budget: double-buffered blocks + f32 accumulator/score temps.
    vmem_bytes = (
        2 * T * E * itemsize            # x row block (double-buffered)
        + 2 * T * E * itemsize          # output block (double-buffered)
        + 3 * 2 * E * D * itemsize      # per-head q/k/v weight blocks
        + 2 * D * E * itemsize          # per-head projection weight block
        + E * 4                         # bias (single-buffered)
        + T * E * 4                     # f32 accumulator scratch
        + 2 * T * T * 4                 # scores + exp f32 temporaries
        + 3 * T * D * 4                 # q/k/v f32 temporaries
    )
    vmem_limit = int(min(64 * 1024 * 1024, max(2 * vmem_bytes, 4 * 1024 * 1024)))

    out = pl.pallas_call(
        _mha_kernel,
        out_shape=jax.ShapeDtypeStruct((B, T, E), dtype),
        grid_spec=pltpu.PrefetchScalarGridSpec(
            num_scalar_prefetch=0,
            grid=(B, H),
            in_specs=[
                pl.BlockSpec((1, T, E), lambda b, h: (b, 0, 0)),    # x row (resident across heads)
                pl.BlockSpec((1, E, D), lambda b, h: (h, 0, 0)),    # wq[h] (scale folded in)
                pl.BlockSpec((1, E, D), lambda b, h: (h, 0, 0)),    # wk[h]
                pl.BlockSpec((1, E, D), lambda b, h: (h, 0, 0)),    # wv[h]
                pl.BlockSpec((1, D, E), lambda b, h: (h, 0, 0)),    # proj slice (in, out)
                pl.BlockSpec((1, E), lambda b, h: (0, 0),
                             pipeline_mode=pl.Buffered(1)),         # bias: constant, single-buffered
            ],
            out_specs=pl.BlockSpec((1, T, E), lambda b, h: (b, 0, 0)),
            scratch_shapes=[pltpu.VMEM((T, E), jnp.float32)],       # per-row f32 accumulator
        ),
        compiler_params=pltpu.CompilerParams(
            dimension_semantics=("parallel", "arbitrary"),
            vmem_limit_bytes=vmem_limit,
        ),
    )(x, wq_s, wk_s, wv_s, wp_heads, b2)

    # nn.Dropout: identity in eval mode.
    return out


# ---------------------------------------------------------------------------
# Pure-JAX reference (same math as the PyTorch module, eval mode).
# ---------------------------------------------------------------------------
def _reference(x, wq, wk, wv, w_proj, b_proj):
    heads = []
    for h in range(wq.shape[0]):
        q = x @ wq[h]
        k = x @ wk[h]
        v = x @ wv[h]
        scores = (q @ jnp.swapaxes(k, -2, -1)) / (wq.shape[-1] ** 0.5)
        probs = jax.nn.softmax(scores, axis=-1)
        heads.append(probs @ v)
    cat = jnp.concatenate(heads, axis=-1)
    return cat @ w_proj.T + b_proj


if __name__ == "__main__":
    # Small shapes consistent with the module: n_embd = num_heads * head_size.
    B, T = 2, 8
    n_embd, num_heads, head_size = 32, 4, 8

    key = jax.random.PRNGKey(0)
    kx, kq, kk, kv, kw, kb = jax.random.split(key, 6)

    x = jax.random.normal(kx, (B, T, n_embd), dtype=jnp.float32)

    # kaiming_normal_ on a (n_embd, head_size) tensor: std = sqrt(2 / fan_in),
    # torch fan_in = head_size for a 2-D tensor.
    std = (2.0 / head_size) ** 0.5
    wq = jax.random.normal(kq, (num_heads, n_embd, head_size), jnp.float32) * std
    wk = jax.random.normal(kk, (num_heads, n_embd, head_size), jnp.float32) * std
    wv = jax.random.normal(kv, (num_heads, n_embd, head_size), jnp.float32) * std

    # nn.Linear(n_embd, n_embd): W is (out, in), uniform(-1/sqrt(in), 1/sqrt(in)).
    bound = 1.0 / (n_embd ** 0.5)
    w_proj = jax.random.uniform(kw, (n_embd, n_embd), jnp.float32, -bound, bound)
    b_proj = jax.random.uniform(kb, (n_embd,), jnp.float32, -bound, bound)

    out = jax.block_until_ready(
        multi_head_attention(x, wq, wk, wv, w_proj, b_proj))

    ref = _reference(x, wq, wk, wv, w_proj, b_proj)
    assert out.shape == (B, T, n_embd)
    assert jnp.allclose(out, ref, atol=2e-3, rtol=2e-3), "mismatch vs reference"

    print("KERNEL_OK")
</pallas_src>

<mosaic_0001>
module attributes {stable_mosaic.version = 11 : i64} {
  func.func @_mha_kernel(%arg0: i32, %arg1: i32, %arg2: memref<1x8x32xf32, #tpu.memory_space<vmem>>, %arg3: memref<1x32x8xf32, #tpu.memory_space<vmem>>, %arg4: memref<1x32x8xf32, #tpu.memory_space<vmem>>, %arg5: memref<1x32x8xf32, #tpu.memory_space<vmem>>, %arg6: memref<1x8x32xf32, #tpu.memory_space<vmem>>, %arg7: memref<1x32xf32, #tpu.memory_space<vmem>>, %arg8: memref<1x8x32xf32, #tpu.memory_space<vmem>>, %arg9: memref<8x32xf32, #tpu.memory_space<vmem>>) attributes {dimension_semantics = [#tpu.dimension_semantics<parallel>, #tpu.dimension_semantics<arbitrary>], iteration_bounds = array<i64: 2, 4>, scalar_prefetch = 0 : i64, scratch_operands = 1 : i64, tpu.core_type = #tpu.core_type<tc>, window_params = [{transform_indices = @transform_0, window_bounds = array<i64: 1, 8, 32>}, {transform_indices = @transform_1, window_bounds = array<i64: 1, 32, 8>}, {transform_indices = @transform_2, window_bounds = array<i64: 1, 32, 8>}, {transform_indices = @transform_3, window_bounds = array<i64: 1, 32, 8>}, {transform_indices = @transform_4, window_bounds = array<i64: 1, 8, 32>}, {pipeline_mode = #tpu.pipeline_mode<synchronous>, transform_indices = @transform_5, window_bounds = array<i64: 1, 32>}, {transform_indices = @transform_6, window_bounds = array<i64: 1, 8, 32>}]} {
    %c0_i32 = arith.constant 0 : i32
    %0 = arith.cmpi eq, %arg1, %c0_i32 : i32
    %1 = arith.extui %0 : i1 to i32
    %c0_i32_0 = arith.constant 0 : i32
    %2 = arith.cmpi ne, %1, %c0_i32_0 : i32
    scf.if %2 {
      %c0_28 = arith.constant 0 : index
      %c0_29 = arith.constant 0 : index
      %36 = vector.load %arg7[%c0_28, %c0_29] : memref<1x32xf32, #tpu.memory_space<vmem>>, vector<1x32xf32>
      %37 = vector.shape_cast %36 : vector<1x32xf32> to vector<1x32xf32>
      %38 = vector.broadcast %37 : vector<1x32xf32> to vector<8x32xf32>
      %c0_30 = arith.constant 0 : index
      %c0_31 = arith.constant 0 : index
      %39 = vector.load %arg9[%c0_30, %c0_31] : memref<8x32xf32, #tpu.memory_space<vmem>>, vector<8x32xf32>
      tpu.vector_store %arg9[%c0_30, %c0_31], %38 {strides = array<i32>} : memref<8x32xf32, #tpu.memory_space<vmem>>, vector<8x32xf32>,
    } else {
    }
    %c0 = arith.constant 0 : index
    %c0_1 = arith.constant 0 : index
    %c0_2 = arith.constant 0 : index
    %3 = vector.load %arg2[%c0, %c0_1, %c0_2] : memref<1x8x32xf32, #tpu.memory_space<vmem>>, vector<1x8x32xf32>
    %4 = vector.shape_cast %3 : vector<1x8x32xf32> to vector<8x32xf32>
    %c0_3 = arith.constant 0 : index
    %c0_4 = arith.constant 0 : index
    %c0_5 = arith.constant 0 : index
    %5 = vector.load %arg3[%c0_3, %c0_4, %c0_5] : memref<1x32x8xf32, #tpu.memory_space<vmem>>, vector<1x32x8xf32>
    %6 = vector.shape_cast %5 : vector<1x32x8xf32> to vector<32x8xf32>
    %cst = arith.constant dense<0.000000e+00> : vector<8x8xf32>
    %7 = tpu.matmul %4, %6, %cst {dimension_numbers = #tpu.dot_dimension_numbers<[1], [0], [0], [1], [0, 0, 1, 1], [], []>, precision = #tpu.contract_precision<fp32>} : vector<8x32xf32>, vector<32x8xf32>, vector<8x8xf32> -> vector<8x8xf32>
    %c0_6 = arith.constant 0 : index
    %c0_7 = arith.constant 0 : index
    %c0_8 = arith.constant 0 : index
    %8 = vector.load %arg4[%c0_6, %c0_7, %c0_8] : memref<1x32x8xf32, #tpu.memory_space<vmem>>, vector<1x32x8xf32>
    %9 = vector.shape_cast %8 : vector<1x32x8xf32> to vector<32x8xf32>
    %cst_9 = arith.constant dense<0.000000e+00> : vector<8x8xf32>
    %10 = tpu.matmul %4, %9, %cst_9 {dimension_numbers = #tpu.dot_dimension_numbers<[1], [0], [0], [1], [0, 0, 1, 1], [], []>, precision = #tpu.contract_precision<fp32>} : vector<8x32xf32>, vector<32x8xf32>, vector<8x8xf32> -> vector<8x8xf32>
    %c0_10 = arith.constant 0 : index
    %c0_11 = arith.constant 0 : index
    %c0_12 = arith.constant 0 : index
    %11 = vector.load %arg5[%c0_10, %c0_11, %c0_12] : memref<1x32x8xf32, #tpu.memory_space<vmem>>, vector<1x32x8xf32>
    %12 = vector.shape_cast %11 : vector<1x32x8xf32> to vector<32x8xf32>
    %cst_13 = arith.constant dense<0.000000e+00> : vector<8x8xf32>
    %13 = tpu.matmul %4, %12, %cst_13 {dimension_numbers = #tpu.dot_dimension_numbers<[1], [0], [0], [1], [0, 0, 1, 1], [], []>, precision = #tpu.contract_precision<fp32>} : vector<8x32xf32>, vector<32x8xf32>, vector<8x8xf32> -> vector<8x8xf32>
    %cst_14 = arith.constant dense<0.000000e+00> : vector<8x8xf32>
    %14 = tpu.matmul %7, %10, %cst_14 {dimension_numbers = #tpu.dot_dimension_numbers<[1], [1], [0], [0], [0, 0, 1, 0], [], []>, precision = #tpu.contract_precision<fp32>} : vector<8x8xf32>, vector<8x8xf32>, vector<8x8xf32> -> vector<8x8xf32>
    %cst_15 = arith.constant dense<0xFF800000> : vector<8xf32>
    %15 = vector.multi_reduction <maximumf>, %14, %cst_15 [1] : vector<8x8xf32> to vector<8xf32>
    %16 = vector.shape_cast %15 : vector<8xf32> to vector<8x1xf32>
    %17 = vector.broadcast %16 : vector<8x1xf32> to vector<8x8xf32>
    %18 = arith.subf %14, %17 : vector<8x8xf32>
    %19 = math.exp %18 : vector<8x8xf32>
    %cst_16 = arith.constant dense<0.000000e+00> : vector<8xf32>
    %20 = vector.multi_reduction <add>, %19, %cst_16 [1] : vector<8x8xf32> to vector<8xf32>
    %21 = vector.shape_cast %20 : vector<8xf32> to vector<8x1xf32>
    %cst_17 = arith.constant 1.000000e+00 : f32
    %22 = vector.broadcast %cst_17 : f32 to vector<8x1xf32>
    %23 = arith.divf %22, %21 : vector<8x1xf32>
    %24 = vector.broadcast %23 : vector<8x1xf32> to vector<8x8xf32>
    %25 = arith.mulf %19, %24 : vector<8x8xf32>
    %cst_18 = arith.constant dense<0.000000e+00> : vector<8x8xf32>
    %26 = tpu.matmul %25, %13, %cst_18 {dimension_numbers = #tpu.dot_dimension_numbers<[1], [0], [0], [1], [0, 0, 1, 1], [], []>, precision = #tpu.contract_precision<fp32>} : vector<8x8xf32>, vector<8x8xf32>, vector<8x8xf32> -> vector<8x8xf32>
    %c0_19 = arith.constant 0 : index
    %c0_20 = arith.constant 0 : index
    %c0_21 = arith.constant 0 : index
    %27 = vector.load %arg6[%c0_19, %c0_20, %c0_21] : memref<1x8x32xf32, #tpu.memory_space<vmem>>, vector<1x8x32xf32>
    %28 = vector.shape_cast %27 : vector<1x8x32xf32> to vector<8x32xf32>
    %c0_22 = arith.constant 0 : index
    %c0_23 = arith.constant 0 : index
    %29 = vector.load %arg9[%c0_22, %c0_23] : memref<8x32xf32, #tpu.memory_space<vmem>>, vector<8x32xf32>
    %cst_24 = arith.constant dense<0.000000e+00> : vector<8x32xf32>
    %30 = tpu.matmul %26, %28, %cst_24 {dimension_numbers = #tpu.dot_dimension_numbers<[1], [0], [0], [1], [0, 0, 1, 1], [], []>, precision = #tpu.contract_precision<fp32>} : vector<8x8xf32>, vector<8x32xf32>, vector<8x32xf32> -> vector<8x32xf32>
    %31 = arith.addf %29, %30 : vector<8x32xf32>
    %c0_25 = arith.constant 0 : index
    %c0_26 = arith.constant 0 : index
    %32 = vector.load %arg9[%c0_25, %c0_26] : memref<8x32xf32, #tpu.memory_space<vmem>>, vector<8x32xf32>
    tpu.vector_store %arg9[%c0_25, %c0_26], %31 {strides = array<i32>} : memref<8x32xf32, #tpu.memory_space<vmem>>, vector<8x32xf32>,
    %c3_i32 = arith.constant 3 : i32
    %33 = arith.cmpi eq, %arg1, %c3_i32 : i32
    %34 = arith.extui %33 : i1 to i32
    %c0_i32_27 = arith.constant 0 : i32
    %35 = arith.cmpi ne, %34, %c0_i32_27 : i32
    scf.if %35 {
      %c0_28 = arith.constant 0 : index
      %c0_29 = arith.constant 0 : index
      %36 = vector.load %arg9[%c0_28, %c0_29] : memref<8x32xf32, #tpu.memory_space<vmem>>, vector<8x32xf32>
      %c0_30 = arith.constant 0 : index
      %c0_31 = arith.constant 0 : index
      %c0_32 = arith.constant 0 : index
      %37 = vector.load %arg8[%c0_30, %c0_31, %c0_32] : memref<1x8x32xf32, #tpu.memory_space<vmem>>, vector<1x8x32xf32>
      %38 = vector.shape_cast %37 : vector<1x8x32xf32> to vector<8x32xf32>
      %39 = vector.shape_cast %36 : vector<8x32xf32> to vector<1x8x32xf32>
      tpu.vector_store %arg8[%c0_30, %c0_31, %c0_32], %39 {strides = array<i32>} : memref<1x8x32xf32, #tpu.memory_space<vmem>>, vector<1x8x32xf32>,
    } else {
    }
    return
  }
  func.func @transform_0(%arg0: i32, %arg1: i32) -> (i32, i32, i32) {
    %c0_i32 = arith.constant 0 : i32
    %c0_i32_0 = arith.constant 0 : i32
    %c0_i32_1 = arith.constant 0 : i32
    return %arg0, %c0_i32, %c0_i32_0 : i32, i32, i32
  }
  func.func @transform_1(%arg0: i32, %arg1: i32) -> (i32, i32, i32) {
    %c0_i32 = arith.constant 0 : i32
    %c0_i32_0 = arith.constant 0 : i32
    %c0_i32_1 = arith.constant 0 : i32
    return %arg1, %c0_i32, %c0_i32_0 : i32, i32, i32
  }
  func.func @transform_2(%arg0: i32, %arg1: i32) -> (i32, i32, i32) {
    %c0_i32 = arith.constant 0 : i32
    %c0_i32_0 = arith.constant 0 : i32
    %c0_i32_1 = arith.constant 0 : i32
    return %arg1, %c0_i32, %c0_i32_0 : i32, i32, i32
  }
  func.func @transform_3(%arg0: i32, %arg1: i32) -> (i32, i32, i32) {
    %c0_i32 = arith.constant 0 : i32
    %c0_i32_0 = arith.constant 0 : i32
    %c0_i32_1 = arith.constant 0 : i32
    return %arg1, %c0_i32, %c0_i32_0 : i32, i32, i32
  }
  func.func @transform_4(%arg0: i32, %arg1: i32) -> (i32, i32, i32) {
    %c0_i32 = arith.constant 0 : i32
    %c0_i32_0 = arith.constant 0 : i32
    %c0_i32_1 = arith.constant 0 : i32
    return %arg1, %c0_i32, %c0_i32_0 : i32, i32, i32
  }
  func.func @transform_5(%arg0: i32, %arg1: i32) -> (i32, i32) {
    %c0_i32 = arith.constant 0 : i32
    %c0_i32_0 = arith.constant 0 : i32
    %c0_i32_1 = arith.constant 0 : i32
    return %c0_i32, %c0_i32_0 : i32, i32
  }
  func.func @transform_6(%arg0: i32, %arg1: i32) -> (i32, i32, i32) {
    %c0_i32 = arith.constant 0 : i32
    %c0_i32_0 = arith.constant 0 : i32
    %c0_i32_1 = arith.constant 0 : i32
    return %arg0, %c0_i32, %c0_i32_0 : i32, i32, i32
  }
}

</mosaic_0001>

<llo_original>
// kernel: tpu_custom_call.1
$region0: #{tpu_custom_call.1}
  #allocation0 [shape = 'u32[]', space=smem, size = 0x4, offset = 0x4, fixed_abs, tag = 'smem constant byte address 0x4 - core index']
  #allocation1 [shape = 'u32[72,128]{1,0:T(1,128)}', space=vmem, size = 0x9000, scoped, tag = 'internal scratch']
  #allocation2 [shape = 'f32[8,32]{1,0:T(8,128)}', space=vmem, size = 0x1000, scoped, tag = 'scratch operand']
  %s0 = inlined_call_operand.vmem [shape: f32[2,8,32], index: 0, kind: input, shape index: {}]
  %s1 = inlined_call_operand.vmem [shape: f32[4,32,8], index: 1, kind: input, shape index: {}]
  %s2 = inlined_call_operand.vmem [shape: f32[4,32,8], index: 2, kind: input, shape index: {}]
  %s3 = inlined_call_operand.vmem [shape: f32[4,32,8], index: 3, kind: input, shape index: {}]
  %s4 = inlined_call_operand.vmem [shape: f32[4,8,32], index: 4, kind: input, shape index: {}]
  %s5 = inlined_call_operand.vmem [shape: f32[1,32], index: 5, kind: input, shape index: {}]
  %s6 = inlined_call_operand.hbm [shape: f32[2,8,32], index: 6, kind: output, shape index: {}]
  %s7 = sld [smem:[#allocation0]]
  $region65: #{tpu_custom_call.1} parent=0
    _
  %s9 = ssub.s32 1, %s7
  %s10 = scalar_select 0, %s9, %s7
  $region1: #{tpu_custom_call.1} parent=0
    #allocation3 [shape = 'u8[8192]{0}', space=vmem, size = 0x2000, scoped, tag = 'output window, operand 0']
    #allocation4 [shape = 's32[2]{0}', space=sflag, size = 0x8, scoped, tag = 'scoped memory for tpu_custom_call.1']
    %11 = vsyncpa [#allocation4], 0
    %s12 = scalar_lea.sflag [#allocation4], 1
    %13 = vsyncpa %s12, 0
    loop: start=0, step=1, limit=10
    $region2: #{tpu_custom_call.1} parent=1 // loop_pre_header
      _
    $region3: #{tpu_custom_call.1} parent=1 // loop_header
      %s15 = sphi 0, %s19
      %p16 = scmp.ge.s32.totalorder %s15, 10
      %s22 = sphi 0, %s34
      %s23 = sphi 0, %s30
      %s24 = sphi 0, %s22
      %s25 = sphi 0, %s23
      %s26 = sphi 0, %s24
      %s27 = sphi 0, %s25
      %s37 = sphi 0, %s39
      %s40 = sphi 0, %s37
      %s41 = sphi 0, %s40
      %s57 = sphi 0, %s41
      %s63 = sphi 0, %s65
      %s66 = sphi 0, %s63
      %s67 = sphi 0, %s66
      %s83 = sphi 0, %s67
      %s89 = sphi 0, %s91
      %s92 = sphi 0, %s89
      %s93 = sphi 0, %s92
      %s109 = sphi 0, %s93
      %s115 = sphi 0, %s117
      %s118 = sphi 0, %s115
      %s119 = sphi 0, %s118
      %s135 = sphi 0, %s119
      %s141 = sphi 0, %s143
      %s144 = sphi 0, %s141
      %s145 = sphi 0, %s144
      %s161 = sphi 0, %s145
      %s165 = sphi 0, %s165
      %s167 = sphi 0, %s165
      %s168 = sphi 0, %s167
      %s182 = sphi 0, %s168
      %s188 = sphi 0, %s190
      %s191 = sphi 0, %s188
      %s192 = sphi 0, %s191
      %s208 = sphi 0, %s192
    $region4: #{tpu_custom_call.1} parent=1 // loop_header_branch
      %18 = sbr.rel (%p16) target = $region8
    $region5: #{tpu_custom_call.1} parent=1 // loop_body
      %s20 = ssub.s32 %s15, 1
      %s21 = ssub.s32 %s15, 2
      %s28 = sadd.s32 1, %s23
      %p29 = scmp.ge.s32.totalorder %s28, 4
      %s30 = scalar_select %p29, 0, %s28
      %s31 = sadd.s32 1, %s22
      %s32 = scalar_select %p29, %s31, %s22
      %p33 = scmp.ge.s32.totalorder %s32, 2
      %s34 = scalar_select %p33, 0, %s32
      %s35 = ssub.s32 %s22, %s34
      %p36 = scmp.eq.s32.totalorder %s35, 0
      %s38 = sadd.s32 %s37, 1
      %s39 = scalar_select %p36, %s37, %s38
      %p42 = pneg %p36
      %p43 = scmp.eq.s32.totalorder %s15, 7
      %p44 = por %p42, %p43
      %p45 = scmp.ne.s32.totalorder %s37, %s40
      %p46 = scmp.eq.s32.totalorder %s15, 0
      %p47 = por %p45, %p46
      %p48 = scmp.ne.s32.totalorder %s37, %s40
      %p49 = scmp.eq.s32.totalorder %s20, 7
      %p50 = por %p48, %p49
      %p51 = scmp.ne.s32.totalorder %s40, %s41
      %p52 = scmp.eq.s32.totalorder %s20, 0
      %p53 = por %p51, %p52
      %p54 = scmp.ne.s32.totalorder %s40, %s41
      %p55 = scmp.eq.s32.totalorder %s21, 7
      %p56 = por %p54, %p55
      %p58 = scmp.ne.s32.totalorder %s41, %s57
      %p59 = scmp.eq.s32.totalorder %s21, 0
      %p60 = por %p58, %p59
      %s61 = ssub.s32 %s23, %s30
      %p62 = scmp.eq.s32.totalorder %s61, 0
      %s64 = sadd.s32 %s63, 1
      %s65 = scalar_select %p62, %s63, %s64
      %p68 = pneg %p62
      %p69 = scmp.eq.s32.totalorder %s15, 7
      %p70 = por %p68, %p69
      %p71 = scmp.ne.s32.totalorder %s63, %s66
      %p72 = scmp.eq.s32.totalorder %s15, 0
      %p73 = por %p71, %p72
      %p74 = scmp.ne.s32.totalorder %s63, %s66
      %p75 = scmp.eq.s32.totalorder %s20, 7
      %p76 = por %p74, %p75
      %p77 = scmp.ne.s32.totalorder %s66, %s67
      %p78 = scmp.eq.s32.totalorder %s20, 0
      %p79 = por %p77, %p78
      %p80 = scmp.ne.s32.totalorder %s66, %s67
      %p81 = scmp.eq.s32.totalorder %s21, 7
      %p82 = por %p80, %p81
      %p84 = scmp.ne.s32.totalorder %s67, %s83
      %p85 = scmp.eq.s32.totalorder %s21, 0
      %p86 = por %p84, %p85
      %s87 = ssub.s32 %s23, %s30
      %p88 = scmp.eq.s32.totalorder %s87, 0
      %s90 = sadd.s32 %s89, 1
      %s91 = scalar_select %p88, %s89, %s90
      %p94 = pneg %p88
      %p95 = scmp.eq.s32.totalorder %s15, 7
      %p96 = por %p94, %p95
      %p97 = scmp.ne.s32.totalorder %s89, %s92
      %p98 = scmp.eq.s32.totalorder %s15, 0
      %p99 = por %p97, %p98
      %p100 = scmp.ne.s32.totalorder %s89, %s92
      %p101 = scmp.eq.s32.totalorder %s20, 7
      %p102 = por %p100, %p101
      %p103 = scmp.ne.s32.totalorder %s92, %s93
      %p104 = scmp.eq.s32.totalorder %s20, 0
      %p105 = por %p103, %p104
      %p106 = scmp.ne.s32.totalorder %s92, %s93
      %p107 = scmp.eq.s32.totalorder %s21, 7
      %p108 = por %p106, %p107
      %p110 = scmp.ne.s32.totalorder %s93, %s109
      %p111 = scmp.eq.s32.totalorder %s21, 0
      %p112 = por %p110, %p111
      %s113 = ssub.s32 %s23, %s30
      %p114 = scmp.eq.s32.totalorder %s113, 0
      %s116 = sadd.s32 %s115, 1
      %s117 = scalar_select %p114, %s115, %s116
      %p120 = pneg %p114
      %p121 = scmp.eq.s32.totalorder %s15, 7
      %p122 = por %p120, %p121
      %p123 = scmp.ne.s32.totalorder %s115, %s118
      %p124 = scmp.eq.s32.totalorder %s15, 0
      %p125 = por %p123, %p124
      %p126 = scmp.ne.s32.totalorder %s115, %s118
      %p127 = scmp.eq.s32.totalorder %s20, 7
      %p128 = por %p126, %p127
      %p129 = scmp.ne.s32.totalorder %s118, %s119
      %p130 = scmp.eq.s32.totalorder %s20, 0
      %p131 = por %p129, %p130
      %p132 = scmp.ne.s32.totalorder %s118, %s119
      %p133 = scmp.eq.s32.totalorder %s21, 7
      %p134 = por %p132, %p133
      %p136 = scmp.ne.s32.totalorder %s119, %s135
      %p137 = scmp.eq.s32.totalorder %s21, 0
      %p138 = por %p136, %p137
      %s139 = ssub.s32 %s23, %s30
      %p140 = scmp.eq.s32.totalorder %s139, 0
      %s142 = sadd.s32 %s141, 1
      %s143 = scalar_select %p140, %s141, %s142
      %p146 = pneg %p140
      %p147 = scmp.eq.s32.totalorder %s15, 7
      %p148 = por %p146, %p147
      %p149 = scmp.ne.s32.totalorder %s141, %s144
      %p150 = scmp.eq.s32.totalorder %s15, 0
      %p151 = por %p149, %p150
      %p152 = scmp.ne.s32.totalorder %s141, %s144
      %p153 = scmp.eq.s32.totalorder %s20, 7
      %p154 = por %p152, %p153
      %p155 = scmp.ne.s32.totalorder %s144, %s145
      %p156 = scmp.eq.s32.totalorder %s20, 0
      %p157 = por %p155, %p156
      %p158 = scmp.ne.s32.totalorder %s144, %s145
      %p159 = scmp.eq.s32.totalorder %s21, 7
      %p160 = por %p158, %p159
      %p162 = scmp.ne.s32.totalorder %s145, %s161
      %p163 = scmp.eq.s32.totalorder %s21, 0
      %p164 = por %p162, %p163
      %s166 = sadd.s32 %s165, 1
      %p169 = scmp.eq.s32.totalorder %s15, 7
      %p170 = scmp.ne.s32.totalorder %s165, %s167
      %p171 = scmp.eq.s32.totalorder %s15, 0
      %p172 = por %p170, %p171
      %p173 = scmp.ne.s32.totalorder %s165, %s167
      %p174 = scmp.eq.s32.totalorder %s20, 7
      %p175 = por %p173, %p174
      %p176 = scmp.ne.s32.totalorder %s167, %s168
      %p177 = scmp.eq.s32.totalorder %s20, 0
      %p178 = por %p176, %p177
      %p179 = scmp.ne.s32.totalorder %s167, %s168
      %p180 = scmp.eq.s32.totalorder %s21, 7
      %p181 = por %p179, %p180
      %p183 = scmp.ne.s32.totalorder %s168, %s182
      %p184 = scmp.eq.s32.totalorder %s21, 0
      %p185 = por %p183, %p184
      %s186 = ssub.s32 %s22, %s34
      %p187 = scmp.eq.s32.totalorder %s186, 0
      %s189 = sadd.s32 %s188, 1
      %s190 = scalar_select %p187, %s188, %s189
      %p193 = pneg %p187
      %p194 = scmp.eq.s32.totalorder %s15, 7
      %p195 = por %p193, %p194
      %p196 = scmp.ne.s32.totalorder %s188, %s191
      %p197 = scmp.eq.s32.totalorder %s15, 0
      %p198 = por %p196, %p197
      %p199 = scmp.ne.s32.totalorder %s188, %s191
      %p200 = scmp.eq.s32.totalorder %s20, 7
      %p201 = por %p199, %p200
      %p202 = scmp.ne.s32.totalorder %s191, %s192
      %p203 = scmp.eq.s32.totalorder %s20, 0
      %p204 = por %p202, %p203
      %p205 = scmp.ne.s32.totalorder %s191, %s192
      %p206 = scmp.eq.s32.totalorder %s21, 7
      %p207 = por %p205, %p206
      %p209 = scmp.ne.s32.totalorder %s192, %s208
      %p210 = scmp.eq.s32.totalorder %s21, 0
      %p211 = por %p209, %p210
      %p212 = scmp.le.s32.totalorder 1, %s15
      %p213 = scmp.lt.s32.totalorder %s15, 9
      %p214 = pnand %p212, %p213
      %p215 = pneg %p214
      // Predicated region
      $region9: #{tpu_custom_call.1} parent=5 // pred_check
        _
      $region10: #{tpu_custom_call.1} parent=5 // pred_check_branch
        %217 = sbr.rel (%p214) target = $region12
      $region11: #{tpu_custom_call.1} parent=5 // pred_region
        %s218 = ssub.s32 %s15, 1
        // Predicated region
        $region13: #{tpu_custom_call.1} parent=11 // pred_check
          %p219 = pneg %p178
        $region14: #{tpu_custom_call.1} parent=11 // pred_check_branch
          %221 = sbr.rel (%p219) target = $region16
        $region15: #{tpu_custom_call.1} parent=11 // pred_region
          _
        $region16: #{tpu_custom_call.1} parent=11 // pred_fallthru
          _
      $region12: #{tpu_custom_call.1} parent=5 // pred_fallthru
        _
      %p222 = scmp.lt.s32.totalorder %s15, 8
      // Predicated region
      $region17: #{tpu_custom_call.1} parent=5 // pred_check
        %p223 = pneg %p222
      $region18: #{tpu_custom_call.1} parent=5 // pred_check_branch
        %225 = sbr.rel (%p223) target = $region20
      $region19: #{tpu_custom_call.1} parent=5 // pred_region
        // Predicated region
        $region21: #{tpu_custom_call.1} parent=19 // pred_check
          %p226 = pneg %p47
        $region22: #{tpu_custom_call.1} parent=19 // pred_check_branch
          %228 = sbr.rel (%p226) target = $region24
        $region23: #{tpu_custom_call.1} parent=19 // pred_region
          %p229 = scmp.lt.s32.totalorder %s22, 1
          %s230 = scalar_select %p229, %s22, 1
          %s231 = smul.addr %s230, 8
          %s232 = scalar_lea.vmem %s0, %s231
        $region24: #{tpu_custom_call.1} parent=19 // pred_fallthru
          _
        // Predicated region
        $region25: #{tpu_custom_call.1} parent=19 // pred_check
          %p233 = pneg %p73
        $region26: #{tpu_custom_call.1} parent=19 // pred_check_branch
          %235 = sbr.rel (%p233) target = $region28
        $region27: #{tpu_custom_call.1} parent=19 // pred_region
          %p236 = scmp.lt.s32.totalorder %s23, 3
          %s237 = scalar_select %p236, %s23, 3
          %s238 = smul.addr %s237, 4
          %s239 = smul.addr %s238, 8
          %s240 = scalar_lea.vmem %s1, %s239
        $region28: #{tpu_custom_call.1} parent=19 // pred_fallthru
          _
        // Predicated region
        $region29: #{tpu_custom_call.1} parent=19 // pred_check
          %p241 = pneg %p99
        $region30: #{tpu_custom_call.1} parent=19 // pred_check_branch
          %243 = sbr.rel (%p241) target = $region32
        $region31: #{tpu_custom_call.1} parent=19 // pred_region
          %p244 = scmp.lt.s32.totalorder %s23, 3
          %s245 = scalar_select %p244, %s23, 3
          %s246 = smul.addr %s245, 4
          %s247 = smul.addr %s246, 8
          %s248 = scalar_lea.vmem %s2, %s247
        $region32: #{tpu_custom_call.1} parent=19 // pred_fallthru
          _
        // Predicated region
        $region33: #{tpu_custom_call.1} parent=19 // pred_check
          %p249 = pneg %p125
        $region34: #{tpu_custom_call.1} parent=19 // pred_check_branch
          %251 = sbr.rel (%p249) target = $region36
        $region35: #{tpu_custom_call.1} parent=19 // pred_region
          %p252 = scmp.lt.s32.totalorder %s23, 3
          %s253 = scalar_select %p252, %s23, 3
          %s254 = smul.addr %s253, 4
          %s255 = smul.addr %s254, 8
          %s256 = scalar_lea.vmem %s3, %s255
        $region36: #{tpu_custom_call.1} parent=19 // pred_fallthru
          _
        // Predicated region
        $region37: #{tpu_custom_call.1} parent=19 // pred_check
          %p257 = pneg %p151
        $region38: #{tpu_custom_call.1} parent=19 // pred_check_branch
          %259 = sbr.rel (%p257) target = $region40
        $region39: #{tpu_custom_call.1} parent=19 // pred_region
          %p260 = scmp.lt.s32.totalorder %s23, 3
          %s261 = scalar_select %p260, %s23, 3
          %s262 = smul.addr %s261, 8
          %s263 = scalar_lea.vmem %s4, %s262
        $region40: #{tpu_custom_call.1} parent=19 // pred_fallthru
          _
      $region20: #{tpu_custom_call.1} parent=5 // pred_fallthru
        _
      %p264 = scmp.le.s32.totalorder 1, %s15
      %p265 = scmp.lt.s32.totalorder %s15, 9
      %p266 = pnand %p264, %p265
      %p267 = pneg %p266
      // Predicated region
      $region41: #{tpu_custom_call.1} parent=5 // pred_check
        _
      $region42: #{tpu_custom_call.1} parent=5 // pred_check_branch
        %269 = sbr.rel (%p266) target = $region44
      $region43: #{tpu_custom_call.1} parent=5 // pred_region
        %s270 = ssub.s32 %s15, 1
        %p271 = scmp.lt.s32.totalorder %s24, 1
        %s272 = scalar_select %p271, %s24, 1
        %s273 = smul.addr %s272, 8
        %s274 = scalar_lea.vmem %s0, %s273
        %p275 = pneg %p53
        %p276 = pneg %p50
        %p277 = scmp.lt.s32.totalorder %s25, 3
        %s278 = scalar_select %p277, %s25, 3
        %s279 = smul.addr %s278, 4
        %s280 = smul.addr %s279, 8
        %s281 = scalar_lea.vmem %s1, %s280
        %p282 = pneg %p79
        %p283 = pneg %p76
        %p284 = scmp.lt.s32.totalorder %s25, 3
        %s285 = scalar_select %p284, %s25, 3
        %s286 = smul.addr %s285, 4
        %s287 = smul.addr %s286, 8
        %s288 = scalar_lea.vmem %s2, %s287
        %p289 = pneg %p105
        %p290 = pneg %p102
        %p291 = scmp.lt.s32.totalorder %s25, 3
        %s292 = scalar_select %p291, %s25, 3
        %s293 = smul.addr %s292, 4
        %s294 = smul.addr %s293, 8
        %s295 = scalar_lea.vmem %s3, %s294
        %p296 = pneg %p131
        %p297 = pneg %p128
        %p298 = scmp.lt.s32.totalorder %s25, 3
        %s299 = scalar_select %p298, %s25, 3
        %s300 = smul.addr %s299, 8
        %s301 = scalar_lea.vmem %s4, %s300
        %p302 = pneg %p157
        %p303 = pneg %p154
        %p304 = pneg %p178
        %p305 = pneg %p175
        %p306 = pneg %p204
        %p307 = pneg %p201
        %s308 = sand.u32 %s191, 1
        %s309 = scalar_lea.sflag [#allocation4], %s308
        %s310 = sand.u32 %s191, 1
        %s311 = smul.addr %s310, 8
        %s312 = scalar_lea.vmem [#allocation3], %s311
        %p313 = scmp.lt.s32.totalorder %s24, 1
        %s314 = scalar_select %p313, %s24, 1
        %s315 = smul.addr %s314, 8
        %s316 = scalar_lea.vmem %s0, %s315
        %p317 = scmp.lt.s32.totalorder %s25, 3
        %s318 = scalar_select %p317, %s25, 3
        %s319 = smul.addr %s318, 4
        %s320 = smul.addr %s319, 8
        %s321 = scalar_lea.vmem %s1, %s320
        %p322 = scmp.lt.s32.totalorder %s25, 3
        %s323 = scalar_select %p322, %s25, 3
        %s324 = smul.addr %s323, 4
        %s325 = smul.addr %s324, 8
        %s326 = scalar_lea.vmem %s2, %s325
        %p327 = scmp.lt.s32.totalorder %s25, 3
        %s328 = scalar_select %p327, %s25, 3
        %s329 = smul.addr %s328, 4
        %s330 = smul.addr %s329, 8
        %s331 = scalar_lea.vmem %s3, %s330
        %p332 = scmp.lt.s32.totalorder %s25, 3
        %s333 = scalar_select %p332, %s25, 3
        %s334 = smul.addr %s333, 8
        %s335 = scalar_lea.vmem %s4, %s334
        %p336 = scmp.eq.s32.totalorder %s25, 0
        // Predicated region
        $region45: #{tpu_custom_call.1} parent=43 // pred_check
          %p337 = pneg %p336
        $region46: #{tpu_custom_call.1} parent=43 // pred_check_branch
          %339 = sbr.rel (%p337) target = $region48
        $region47: #{tpu_custom_call.1} parent=43 // pred_region
          %v340 = vld [vmem:[%s5] sm:$0x1]
          %v342 = vperm.slane %v340, 0
          %vm344 = vcmask 261120
          %345 = vst.msk [vmem:[#allocation2] sm:$0xff] %vm344, %v342
        $region48: #{tpu_custom_call.1} parent=43 // pred_fallthru
          _
        %v346 = vld [vmem:[%s316] sm:$0xff]
        %v347 = vld [vmem:[%s321] sm:$0xff]
        %v348 = vld [vmem:[%s321 + $0x8] sm:$0xff]
        %v349 = vld [vmem:[%s321 + $0x10] sm:$0xff]
        %v350 = vld [vmem:[%s321 + $0x18] sm:$0xff]
        %vm351 = vcmask 261120
        %v353 = vsel %vm351, %v346, 0
        %355 = vmatpush.msra.mxu0 0.0
        %356 = vmatpush.msra.mxu0 0.0
        %357 = vmatpush.msra.mxu0 0.0
        %358 = vmatpush.msra.mxu0 0.0
        %359 = vmatpush.msra.mxu0 0.0
        %360 = vmatpush.msra.mxu0 0.0
        %361 = vmatpush.msra.mxu0 0.0
        %362 = vmatpush.msra.mxu0 0.0
        %363 = vmatpush.msra.mxu0 0.0
        %364 = vmatpush.msra.mxu0 0.0
        %365 = vmatpush.msra.mxu0 0.0
        %366 = vmatpush.msra.mxu0 0.0
        %v367 = vand.u32 %v350, 4294901760
        %368 = vmatpush.msra.mxu0 %v367
        %v369 = vand.u32 %v349, 4294901760
        %370 = vmatpush.msra.mxu0 %v369
        %v371 = vand.u32 %v348, 4294901760
        %372 = vmatpush.msra.mxu0 %v371
        %v373 = vand.u32 %v347, 4294901760
        %374 = vmatpush.msra.mxu0 %v373
        %v375 = vand.u32 %v353, 4294901760
        %v376 = vsub.f32 %v353, %v375
        %v377 = vand.u32 %v376, 4294901760
        %v378 = vsub.f32 %v376, %v377
        %v379 = vand.u32 %v378, 4294901760
        %380 = vmatmul.f32.gmra.mxu0 %v379
        %v381 = vpop.f32.mrf.mxu0
        %v382 = vadd.f32 0.0, %v381
        %383 = vdwg.mxu0
        %384 = vmatpush.msra.mxu0 0.0
        %385 = vmatpush.msra.mxu0 0.0
        %386 = vmatpush.msra.mxu0 0.0
        %387 = vmatpush.msra.mxu0 0.0
        %388 = vmatpush.msra.mxu0 0.0
        %389 = vmatpush.msra.mxu0 0.0
        %390 = vmatpush.msra.mxu0 0.0
        %391 = vmatpush.msra.mxu0 0.0
        %392 = vmatpush.msra.mxu0 0.0
        %393 = vmatpush.msra.mxu0 0.0
        %394 = vmatpush.msra.mxu0 0.0
        %395 = vmatpush.msra.mxu0 0.0
        %v396 = vand.u32 %v350, 4294901760
        %v397 = vsub.f32 %v350, %v396
        %v398 = vand.u32 %v397, 4294901760
        %v399 = vsub.f32 %v397, %v398
        %v400 = vand.u32 %v399, 4294901760
        %401 = vmatpush.msra.mxu0 %v400
        %v402 = vand.u32 %v349, 4294901760
        %v403 = vsub.f32 %v349, %v402
        %v404 = vand.u32 %v403, 4294901760
        %v405 = vsub.f32 %v403, %v404
        %v406 = vand.u32 %v405, 4294901760
        %407 = vmatpush.msra.mxu0 %v406
        %v408 = vand.u32 %v348, 4294901760
        %v409 = vsub.f32 %v348, %v408
        %v410 = vand.u32 %v409, 4294901760
        %v411 = vsub.f32 %v409, %v410
        %v412 = vand.u32 %v411, 4294901760
        %413 = vmatpush.msra.mxu0 %v412
        %v414 = vand.u32 %v347, 4294901760
        %v415 = vsub.f32 %v347, %v414
        %v416 = vand.u32 %v415, 4294901760
        %v417 = vsub.f32 %v415, %v416
        %v418 = vand.u32 %v417, 4294901760
        %419 = vmatpush.msra.mxu0 %v418
        %v420 = vand.u32 %v353, 4294901760
        %421 = vmatmul.f32.gmra.mxu0 %v420
        %v422 = vpop.f32.mrf.mxu0
        %v423 = vadd.f32 %v382, %v422
        %424 = vdwg.mxu0
        %425 = vmatpush.msra.mxu0 0.0
        %426 = vmatpush.msra.mxu0 0.0
        %427 = vmatpush.msra.mxu0 0.0
        %428 = vmatpush.msra.mxu0 0.0
        %429 = vmatpush.msra.mxu0 0.0
        %430 = vmatpush.msra.mxu0 0.0
        %431 = vmatpush.msra.mxu0 0.0
        %432 = vmatpush.msra.mxu0 0.0
        %433 = vmatpush.msra.mxu0 0.0
        %434 = vmatpush.msra.mxu0 0.0
        %435 = vmatpush.msra.mxu0 0.0
        %436 = vmatpush.msra.mxu0 0.0
        %v437 = vand.u32 %v350, 4294901760
        %v438 = vsub.f32 %v350, %v437
        %439 = vmatpush.msra.mxu0 %v438
        %v440 = vand.u32 %v349, 4294901760
        %v441 = vsub.f32 %v349, %v440
        %442 = vmatpush.msra.mxu0 %v441
        %v443 = vand.u32 %v348, 4294901760
        %v444 = vsub.f32 %v348, %v443
        %445 = vmatpush.msra.mxu0 %v444
        %v446 = vand.u32 %v347, 4294901760
        %v447 = vsub.f32 %v347, %v446
        %448 = vmatpush.msra.mxu0 %v447
        %v449 = vand.u32 %v353, 4294901760
        %v450 = vsub.f32 %v353, %v449
        %451 = vmatmul.f32.gmra.mxu0 %v450
        %v452 = vpop.f32.mrf.mxu0
        %v453 = vadd.f32 %v423, %v452
        %454 = vdwg.mxu0
        %455 = vmatpush.msra.mxu0 0.0
        %456 = vmatpush.msra.mxu0 0.0
        %457 = vmatpush.msra.mxu0 0.0
        %458 = vmatpush.msra.mxu0 0.0
        %459 = vmatpush.msra.mxu0 0.0
        %460 = vmatpush.msra.mxu0 0.0
        %461 = vmatpush.msra.mxu0 0.0
        %462 = vmatpush.msra.mxu0 0.0
        %463 = vmatpush.msra.mxu0 0.0
        %464 = vmatpush.msra.mxu0 0.0
        %465 = vmatpush.msra.mxu0 0.0
        %466 = vmatpush.msra.mxu0 0.0
        %v467 = vand.u32 %v350, 4294901760
        %468 = vmatpush.msra.mxu0 %v467
        %v469 = vand.u32 %v349, 4294901760
        %470 = vmatpush.msra.mxu0 %v469
        %v471 = vand.u32 %v348, 4294901760
        %472 = vmatpush.msra.mxu0 %v471
        %v473 = vand.u32 %v347, 4294901760
        %474 = vmatpush.msra.mxu0 %v473
        %v475 = vand.u32 %v353, 4294901760
        %v476 = vsub.f32 %v353, %v475
        %v477 = vand.u32 %v476, 4294901760
        %478 = vmatmul.f32.gmra.mxu0 %v477
        %v479 = vpop.f32.mrf.mxu0
        %v480 = vadd.f32 %v453, %v479
        %481 = vdwg.mxu0
        %482 = vmatpush.msra.mxu0 0.0
        %483 = vmatpush.msra.mxu0 0.0
        %484 = vmatpush.msra.mxu0 0.0
        %485 = vmatpush.msra.mxu0 0.0
        %486 = vmatpush.msra.mxu0 0.0
        %487 = vmatpush.msra.mxu0 0.0
        %488 = vmatpush.msra.mxu0 0.0
        %489 = vmatpush.msra.mxu0 0.0
        %490 = vmatpush.msra.mxu0 0.0
        %491 = vmatpush.msra.mxu0 0.0
        %492 = vmatpush.msra.mxu0 0.0
        %493 = vmatpush.msra.mxu0 0.0
        %v494 = vand.u32 %v350, 4294901760
        %v495 = vsub.f32 %v350, %v494
        %v496 = vand.u32 %v495, 4294901760
        %497 = vmatpush.msra.mxu0 %v496
        %v498 = vand.u32 %v349, 4294901760
        %v499 = vsub.f32 %v349, %v498
        %v500 = vand.u32 %v499, 4294901760
        %501 = vmatpush.msra.mxu0 %v500
        %v502 = vand.u32 %v348, 4294901760
        %v503 = vsub.f32 %v348, %v502
        %v504 = vand.u32 %v503, 4294901760
        %505 = vmatpush.msra.mxu0 %v504
        %v506 = vand.u32 %v347, 4294901760
        %v507 = vsub.f32 %v347, %v506
        %v508 = vand.u32 %v507, 4294901760
        %509 = vmatpush.msra.mxu0 %v508
        %v510 = vand.u32 %v353, 4294901760
        %511 = vmatmul.f32.gmra.mxu0 %v510
        %v512 = vpop.f32.mrf.mxu0
        %v513 = vadd.f32 %v480, %v512
        %514 = vdwg.mxu0
        %515 = vmatpush.msra.mxu0 0.0
        %516 = vmatpush.msra.mxu0 0.0
        %517 = vmatpush.msra.mxu0 0.0
        %518 = vmatpush.msra.mxu0 0.0
        %519 = vmatpush.msra.mxu0 0.0
        %520 = vmatpush.msra.mxu0 0.0
        %521 = vmatpush.msra.mxu0 0.0
        %522 = vmatpush.msra.mxu0 0.0
        %523 = vmatpush.msra.mxu0 0.0
        %524 = vmatpush.msra.mxu0 0.0
        %525 = vmatpush.msra.mxu0 0.0
        %526 = vmatpush.msra.mxu0 0.0
        %v527 = vand.u32 %v350, 4294901760
        %528 = vmatpush.msra.mxu0 %v527
        %v529 = vand.u32 %v349, 4294901760
        %530 = vmatpush.msra.mxu0 %v529
        %v531 = vand.u32 %v348, 4294901760
        %532 = vmatpush.msra.mxu0 %v531
        %v533 = vand.u32 %v347, 4294901760
        %534 = vmatpush.msra.mxu0 %v533
        %v535 = vand.u32 %v353, 4294901760
        %536 = vmatmul.f32.gmra.mxu0 %v535
        %v537 = vpop.f32.mrf.mxu0
        %v538 = vadd.f32 %v513, %v537
        %539 = vdwg.mxu0
        %v540 = vld [vmem:[%s326] sm:$0xff]
        %v541 = vld [vmem:[%s326 + $0x8] sm:$0xff]
        %v542 = vld [vmem:[%s326 + $0x10] sm:$0xff]
        %v543 = vld [vmem:[%s326 + $0x18] sm:$0xff]
        %544 = vmatpush.msra.mxu0 0.0
        %545 = vmatpush.msra.mxu0 0.0
        %546 = vmatpush.msra.mxu0 0.0
        %547 = vmatpush.msra.mxu0 0.0
        %548 = vmatpush.msra.mxu0 0.0
        %549 = vmatpush.msra.mxu0 0.0
        %550 = vmatpush.msra.mxu0 0.0
        %551 = vmatpush.msra.mxu0 0.0
        %552 = vmatpush.msra.mxu0 0.0
        %553 = vmatpush.msra.mxu0 0.0
        %554 = vmatpush.msra.mxu0 0.0
        %555 = vmatpush.msra.mxu0 0.0
        %v556 = vand.u32 %v543, 4294901760
        %557 = vmatpush.msra.mxu0 %v556
        %v558 = vand.u32 %v542, 4294901760
        %559 = vmatpush.msra.mxu0 %v558
        %v560 = vand.u32 %v541, 4294901760
        %561 = vmatpush.msra.mxu0 %v560
        %v562 = vand.u32 %v540, 4294901760
        %563 = vmatpush.msra.mxu0 %v562
        %v564 = vand.u32 %v353, 4294901760
        %v565 = vsub.f32 %v353, %v564
        %v566 = vand.u32 %v565, 4294901760
        %v567 = vsub.f32 %v565, %v566
        %v568 = vand.u32 %v567, 4294901760
        %569 = vmatmul.f32.gmra.mxu0 %v568
        %v570 = vpop.f32.mrf.mxu0
        %v571 = vadd.f32 0.0, %v570
        %572 = vdwg.mxu0
        %573 = vmatpush.msra.mxu0 0.0
        %574 = vmatpush.msra.mxu0 0.0
        %575 = vmatpush.msra.mxu0 0.0
        %576 = vmatpush.msra.mxu0 0.0
        %577 = vmatpush.msra.mxu0 0.0
        %578 = vmatpush.msra.mxu0 0.0
        %579 = vmatpush.msra.mxu0 0.0
        %580 = vmatpush.msra.mxu0 0.0
        %581 = vmatpush.msra.mxu0 0.0
        %582 = vmatpush.msra.mxu0 0.0
        %583 = vmatpush.msra.mxu0 0.0
        %584 = vmatpush.msra.mxu0 0.0
        %v585 = vand.u32 %v543, 4294901760
        %v586 = vsub.f32 %v543, %v585
        %v587 = vand.u32 %v586, 4294901760
        %v588 = vsub.f32 %v586, %v587
        %v589 = vand.u32 %v588, 4294901760
        %590 = vmatpush.msra.mxu0 %v589
        %v591 = vand.u32 %v542, 4294901760
        %v592 = vsub.f32 %v542, %v591
        %v593 = vand.u32 %v592, 4294901760
        %v594 = vsub.f32 %v592, %v593
        %v595 = vand.u32 %v594, 4294901760
        %596 = vmatpush.msra.mxu0 %v595
        %v597 = vand.u32 %v541, 4294901760
        %v598 = vsub.f32 %v541, %v597
        %v599 = vand.u32 %v598, 4294901760
        %v600 = vsub.f32 %v598, %v599
        %v601 = vand.u32 %v600, 4294901760
        %602 = vmatpush.msra.mxu0 %v601
        %v603 = vand.u32 %v540, 4294901760
        %v604 = vsub.f32 %v540, %v603
        %v605 = vand.u32 %v604, 4294901760
        %v606 = vsub.f32 %v604, %v605
        %v607 = vand.u32 %v606, 4294901760
        %608 = vmatpush.msra.mxu0 %v607
        %v609 = vand.u32 %v353, 4294901760
        %610 = vmatmul.f32.gmra.mxu0 %v609
        %v611 = vpop.f32.mrf.mxu0
        %v612 = vadd.f32 %v571, %v611
        %613 = vdwg.mxu0
        %614 = vmatpush.msra.mxu0 0.0
        %615 = vmatpush.msra.mxu0 0.0
        %616 = vmatpush.msra.mxu0 0.0
        %617 = vmatpush.msra.mxu0 0.0
        %618 = vmatpush.msra.mxu0 0.0
        %619 = vmatpush.msra.mxu0 0.0
        %620 = vmatpush.msra.mxu0 0.0
        %621 = vmatpush.msra.mxu0 0.0
        %622 = vmatpush.msra.mxu0 0.0
        %623 = vmatpush.msra.mxu0 0.0
        %624 = vmatpush.msra.mxu0 0.0
        %625 = vmatpush.msra.mxu0 0.0
        %v626 = vand.u32 %v543, 4294901760
        %v627 = vsub.f32 %v543, %v626
        %628 = vmatpush.msra.mxu0 %v627
        %v629 = vand.u32 %v542, 4294901760
        %v630 = vsub.f32 %v542, %v629
        %631 = vmatpush.msra.mxu0 %v630
        %v632 = vand.u32 %v541, 4294901760
        %v633 = vsub.f32 %v541, %v632
        %634 = vmatpush.msra.mxu0 %v633
        %v635 = vand.u32 %v540, 4294901760
        %v636 = vsub.f32 %v540, %v635
        %637 = vmatpush.msra.mxu0 %v636
        %v638 = vand.u32 %v353, 4294901760
        %v639 = vsub.f32 %v353, %v638
        %640 = vmatmul.f32.gmra.mxu0 %v639
        %v641 = vpop.f32.mrf.mxu0
        %v642 = vadd.f32 %v612, %v641
        %643 = vdwg.mxu0
        %644 = vmatpush.msra.mxu0 0.0
        %645 = vmatpush.msra.mxu0 0.0
        %646 = vmatpush.msra.mxu0 0.0
        %647 = vmatpush.msra.mxu0 0.0
        %648 = vmatpush.msra.mxu0 0.0
        %649 = vmatpush.msra.mxu0 0.0
        %650 = vmatpush.msra.mxu0 0.0
        %651 = vmatpush.msra.mxu0 0.0
        %652 = vmatpush.msra.mxu0 0.0
        %653 = vmatpush.msra.mxu0 0.0
        %654 = vmatpush.msra.mxu0 0.0
        %655 = vmatpush.msra.mxu0 0.0
        %v656 = vand.u32 %v543, 4294901760
        %657 = vmatpush.msra.mxu0 %v656
        %v658 = vand.u32 %v542, 4294901760
        %659 = vmatpush.msra.mxu0 %v658
        %v660 = vand.u32 %v541, 4294901760
        %661 = vmatpush.msra.mxu0 %v660
        %v662 = vand.u32 %v540, 4294901760
        %663 = vmatpush.msra.mxu0 %v662
        %v664 = vand.u32 %v353, 4294901760
        %v665 = vsub.f32 %v353, %v664
        %v666 = vand.u32 %v665, 4294901760
        %667 = vmatmul.f32.gmra.mxu0 %v666
        %v668 = vpop.f32.mrf.mxu0
        %v669 = vadd.f32 %v642, %v668
        %670 = vdwg.mxu0
        %671 = vmatpush.msra.mxu0 0.0
        %672 = vmatpush.msra.mxu0 0.0
        %673 = vmatpush.msra.mxu0 0.0
        %674 = vmatpush.msra.mxu0 0.0
        %675 = vmatpush.msra.mxu0 0.0
        %676 = vmatpush.msra.mxu0 0.0
        %677 = vmatpush.msra.mxu0 0.0
        %678 = vmatpush.msra.mxu0 0.0
        %679 = vmatpush.msra.mxu0 0.0
        %680 = vmatpush.msra.mxu0 0.0
        %681 = vmatpush.msra.mxu0 0.0
        %682 = vmatpush.msra.mxu0 0.0
        %v683 = vand.u32 %v543, 4294901760
        %v684 = vsub.f32 %v543, %v683
        %v685 = vand.u32 %v684, 4294901760
        %686 = vmatpush.msra.mxu0 %v685
        %v687 = vand.u32 %v542, 4294901760
        %v688 = vsub.f32 %v542, %v687
        %v689 = vand.u32 %v688, 4294901760
        %690 = vmatpush.msra.mxu0 %v689
        %v691 = vand.u32 %v541, 4294901760
        %v692 = vsub.f32 %v541, %v691
        %v693 = vand.u32 %v692, 4294901760
        %694 = vmatpush.msra.mxu0 %v693
        %v695 = vand.u32 %v540, 4294901760
        %v696 = vsub.f32 %v540, %v695
        %v697 = vand.u32 %v696, 4294901760
        %698 = vmatpush.msra.mxu0 %v697
        %v699 = vand.u32 %v353, 4294901760
        %700 = vmatmul.f32.gmra.mxu0 %v699
        %v701 = vpop.f32.mrf.mxu0
        %v702 = vadd.f32 %v669, %v701
        %703 = vdwg.mxu0
        %704 = vmatpush.msra.mxu0 0.0
        %705 = vmatpush.msra.mxu0 0.0
        %706 = vmatpush.msra.mxu0 0.0
        %707 = vmatpush.msra.mxu0 0.0
        %708 = vmatpush.msra.mxu0 0.0
        %709 = vmatpush.msra.mxu0 0.0
        %710 = vmatpush.msra.mxu0 0.0
        %711 = vmatpush.msra.mxu0 0.0
        %712 = vmatpush.msra.mxu0 0.0
        %713 = vmatpush.msra.mxu0 0.0
        %714 = vmatpush.msra.mxu0 0.0
        %715 = vmatpush.msra.mxu0 0.0
        %v716 = vand.u32 %v543, 4294901760
        %717 = vmatpush.msra.mxu0 %v716
        %v718 = vand.u32 %v542, 4294901760
        %719 = vmatpush.msra.mxu0 %v718
        %v720 = vand.u32 %v541, 4294901760
        %721 = vmatpush.msra.mxu0 %v720
        %v722 = vand.u32 %v540, 4294901760
        %723 = vmatpush.msra.mxu0 %v722
        %v724 = vand.u32 %v353, 4294901760
        %725 = vmatmul.f32.gmra.mxu0 %v724
        %v726 = vpop.f32.mrf.mxu0
        %v727 = vadd.f32 %v702, %v726
        %728 = vdwg.mxu0
        %v729 = vld [vmem:[%s331] sm:$0xff]
        %v730 = vld [vmem:[%s331 + $0x8] sm:$0xff]
        %v731 = vld [vmem:[%s331 + $0x10] sm:$0xff]
        %v732 = vld [vmem:[%s331 + $0x18] sm:$0xff]
        %733 = vmatpush.msra.mxu0 0.0
        %734 = vmatpush.msra.mxu0 0.0
        %735 = vmatpush.msra.mxu0 0.0
        %736 = vmatpush.msra.mxu0 0.0
        %737 = vmatpush.msra.mxu0 0.0
        %738 = vmatpush.msra.mxu0 0.0
        %739 = vmatpush.msra.mxu0 0.0
        %740 = vmatpush.msra.mxu0 0.0
        %741 = vmatpush.msra.mxu0 0.0
        %742 = vmatpush.msra.mxu0 0.0
        %743 = vmatpush.msra.mxu0 0.0
        %744 = vmatpush.msra.mxu0 0.0
        %v745 = vand.u32 %v732, 4294901760
        %746 = vmatpush.msra.mxu0 %v745
        %v747 = vand.u32 %v731, 4294901760
        %748 = vmatpush.msra.mxu0 %v747
        %v749 = vand.u32 %v730, 4294901760
        %750 = vmatpush.msra.mxu0 %v749
        %v751 = vand.u32 %v729, 4294901760
        %752 = vmatpush.msra.mxu0 %v751
        %v753 = vand.u32 %v353, 4294901760
        %v754 = vsub.f32 %v353, %v753
        %v755 = vand.u32 %v754, 4294901760
        %v756 = vsub.f32 %v754, %v755
        %v757 = vand.u32 %v756, 4294901760
        %758 = vmatmul.f32.gmra.mxu0 %v757
        %v759 = vpop.f32.mrf.mxu0
        %v760 = vadd.f32 0.0, %v759
        %761 = vdwg.mxu0
        %762 = vmatpush.msra.mxu0 0.0
        %763 = vmatpush.msra.mxu0 0.0
        %764 = vmatpush.msra.mxu0 0.0
        %765 = vmatpush.msra.mxu0 0.0
        %766 = vmatpush.msra.mxu0 0.0
        %767 = vmatpush.msra.mxu0 0.0
        %768 = vmatpush.msra.mxu0 0.0
        %769 = vmatpush.msra.mxu0 0.0
        %770 = vmatpush.msra.mxu0 0.0
        %771 = vmatpush.msra.mxu0 0.0
        %772 = vmatpush.msra.mxu0 0.0
        %773 = vmatpush.msra.mxu0 0.0
        %v774 = vand.u32 %v732, 4294901760
        %v775 = vsub.f32 %v732, %v774
        %v776 = vand.u32 %v775, 4294901760
        %v777 = vsub.f32 %v775, %v776
        %v778 = vand.u32 %v777, 4294901760
        %779 = vmatpush.msra.mxu0 %v778
        %v780 = vand.u32 %v731, 4294901760
        %v781 = vsub.f32 %v731, %v780
        %v782 = vand.u32 %v781, 4294901760
        %v783 = vsub.f32 %v781, %v782
        %v784 = vand.u32 %v783, 4294901760
        %785 = vmatpush.msra.mxu0 %v784
        %v786 = vand.u32 %v730, 4294901760
        %v787 = vsub.f32 %v730, %v786
        %v788 = vand.u32 %v787, 4294901760
        %v789 = vsub.f32 %v787, %v788
        %v790 = vand.u32 %v789, 4294901760
        %791 = vmatpush.msra.mxu0 %v790
        %v792 = vand.u32 %v729, 4294901760
        %v793 = vsub.f32 %v729, %v792
        %v794 = vand.u32 %v793, 4294901760
        %v795 = vsub.f32 %v793, %v794
        %v796 = vand.u32 %v795, 4294901760
        %797 = vmatpush.msra.mxu0 %v796
        %v798 = vand.u32 %v353, 4294901760
        %799 = vmatmul.f32.gmra.mxu0 %v798
        %v800 = vpop.f32.mrf.mxu0
        %v801 = vadd.f32 %v760, %v800
        %802 = vdwg.mxu0
        %803 = vmatpush.msra.mxu0 0.0
        %804 = vmatpush.msra.mxu0 0.0
        %805 = vmatpush.msra.mxu0 0.0
        %806 = vmatpush.msra.mxu0 0.0
        %807 = vmatpush.msra.mxu0 0.0
        %808 = vmatpush.msra.mxu0 0.0
        %809 = vmatpush.msra.mxu0 0.0
        %810 = vmatpush.msra.mxu0 0.0
        %811 = vmatpush.msra.mxu0 0.0
        %812 = vmatpush.msra.mxu0 0.0
        %813 = vmatpush.msra.mxu0 0.0
        %814 = vmatpush.msra.mxu0 0.0
        %v815 = vand.u32 %v732, 4294901760
        %v816 = vsub.f32 %v732, %v815
        %817 = vmatpush.msra.mxu0 %v816
        %v818 = vand.u32 %v731, 4294901760
        %v819 = vsub.f32 %v731, %v818
        %820 = vmatpush.msra.mxu0 %v819
        %v821 = vand.u32 %v730, 4294901760
        %v822 = vsub.f32 %v730, %v821
        %823 = vmatpush.msra.mxu0 %v822
        %v824 = vand.u32 %v729, 4294901760
        %v825 = vsub.f32 %v729, %v824
        %826 = vmatpush.msra.mxu0 %v825
        %v827 = vand.u32 %v353, 4294901760
        %v828 = vsub.f32 %v353, %v827
        %829 = vmatmul.f32.gmra.mxu0 %v828
        %v830 = vpop.f32.mrf.mxu0
        %v831 = vadd.f32 %v801, %v830
        %832 = vdwg.mxu0
        %833 = vmatpush.msra.mxu0 0.0
        %834 = vmatpush.msra.mxu0 0.0
        %835 = vmatpush.msra.mxu0 0.0
        %836 = vmatpush.msra.mxu0 0.0
        %837 = vmatpush.msra.mxu0 0.0
        %838 = vmatpush.msra.mxu0 0.0
        %839 = vmatpush.msra.mxu0 0.0
        %840 = vmatpush.msra.mxu0 0.0
        %841 = vmatpush.msra.mxu0 0.0
        %842 = vmatpush.msra.mxu0 0.0
        %843 = vmatpush.msra.mxu0 0.0
        %844 = vmatpush.msra.mxu0 0.0
        %v845 = vand.u32 %v732, 4294901760
        %846 = vmatpush.msra.mxu0 %v845
        %v847 = vand.u32 %v731, 4294901760
        %848 = vmatpush.msra.mxu0 %v847
        %v849 = vand.u32 %v730, 4294901760
        %850 = vmatpush.msra.mxu0 %v849
        %v851 = vand.u32 %v729, 4294901760
        %852 = vmatpush.msra.mxu0 %v851
        %v853 = vand.u32 %v353, 4294901760
        %v854 = vsub.f32 %v353, %v853
        %v855 = vand.u32 %v854, 4294901760
        %856 = vmatmul.f32.gmra.mxu0 %v855
        %v857 = vpop.f32.mrf.mxu0
        %v858 = vadd.f32 %v831, %v857
        %859 = vdwg.mxu0
        %860 = vmatpush.msra.mxu0 0.0
        %861 = vmatpush.msra.mxu0 0.0
        %862 = vmatpush.msra.mxu0 0.0
        %863 = vmatpush.msra.mxu0 0.0
        %864 = vmatpush.msra.mxu0 0.0
        %865 = vmatpush.msra.mxu0 0.0
        %866 = vmatpush.msra.mxu0 0.0
        %867 = vmatpush.msra.mxu0 0.0
        %868 = vmatpush.msra.mxu0 0.0
        %869 = vmatpush.msra.mxu0 0.0
        %870 = vmatpush.msra.mxu0 0.0
        %871 = vmatpush.msra.mxu0 0.0
        %v872 = vand.u32 %v732, 4294901760
        %v873 = vsub.f32 %v732, %v872
        %v874 = vand.u32 %v873, 4294901760
        %875 = vmatpush.msra.mxu0 %v874
        %v876 = vand.u32 %v731, 4294901760
        %v877 = vsub.f32 %v731, %v876
        %v878 = vand.u32 %v877, 4294901760
        %879 = vmatpush.msra.mxu0 %v878
        %v880 = vand.u32 %v730, 4294901760
        %v881 = vsub.f32 %v730, %v880
        %v882 = vand.u32 %v881, 4294901760
        %883 = vmatpush.msra.mxu0 %v882
        %v884 = vand.u32 %v729, 4294901760
        %v885 = vsub.f32 %v729, %v884
        %v886 = vand.u32 %v885, 4294901760
        %887 = vmatpush.msra.mxu0 %v886
        %v888 = vand.u32 %v353, 4294901760
        %889 = vmatmul.f32.gmra.mxu0 %v888
        %v890 = vpop.f32.mrf.mxu0
        %v891 = vadd.f32 %v858, %v890
        %892 = vdwg.mxu0
        %893 = vmatpush.msra.mxu0 0.0
        %894 = vmatpush.msra.mxu0 0.0
        %895 = vmatpush.msra.mxu0 0.0
        %896 = vmatpush.msra.mxu0 0.0
        %897 = vmatpush.msra.mxu0 0.0
        %898 = vmatpush.msra.mxu0 0.0
        %899 = vmatpush.msra.mxu0 0.0
        %900 = vmatpush.msra.mxu0 0.0
        %901 = vmatpush.msra.mxu0 0.0
        %902 = vmatpush.msra.mxu0 0.0
        %903 = vmatpush.msra.mxu0 0.0
        %904 = vmatpush.msra.mxu0 0.0
        %v905 = vand.u32 %v732, 4294901760
        %906 = vmatpush.msra.mxu0 %v905
        %v907 = vand.u32 %v731, 4294901760
        %908 = vmatpush.msra.mxu0 %v907
        %v909 = vand.u32 %v730, 4294901760
        %910 = vmatpush.msra.mxu0 %v909
        %v911 = vand.u32 %v729, 4294901760
        %912 = vmatpush.msra.mxu0 %v911
        %v913 = vand.u32 %v353, 4294901760
        %914 = vmatmul.f32.gmra.mxu0 %v913
        %v915 = vpop.f32.mrf.mxu0
        %v916 = vadd.f32 %v891, %v915
        %917 = vdwg.mxu0
        %vm918 = vcmask 64512
        %v920 = vsel %vm918, %v538, 0
        %v923 = vsel %vm918, %v727, 0
        %925 = vmatpush.xpose.msra.mxu0 0.0
        %926 = vmatpush.xpose.msra.mxu0 0.0
        %927 = vmatpush.xpose.msra.mxu0 0.0
        %928 = vmatpush.xpose.msra.mxu0 0.0
        %929 = vmatpush.xpose.msra.mxu0 0.0
        %930 = vmatpush.xpose.msra.mxu0 0.0
        %931 = vmatpush.xpose.msra.mxu0 0.0
        %932 = vmatpush.xpose.msra.mxu0 0.0
        %933 = vmatpush.xpose.msra.mxu0 0.0
        %934 = vmatpush.xpose.msra.mxu0 0.0
        %935 = vmatpush.xpose.msra.mxu0 0.0
        %936 = vmatpush.xpose.msra.mxu0 0.0
        %937 = vmatpush.xpose.msra.mxu0 0.0
        %938 = vmatpush.xpose.msra.mxu0 0.0
        %939 = vmatpush.xpose.msra.mxu0 0.0
        %v940 = vand.u32 %v923, 4294901760
        %941 = vmatpush.xpose.msra.mxu0 %v940
        %v942 = vand.u32 %v920, 4294901760
        %v943 = vsub.f32 %v920, %v942
        %v944 = vand.u32 %v943, 4294901760
        %v945 = vsub.f32 %v943, %v944
        %v946 = vand.u32 %v945, 4294901760
        %947 = vmatmul.f32.gmra.mxu0 %v946
        %v948 = vpop.f32.mrf.mxu0
        %v949 = vadd.f32 0.0, %v948
        %950 = vdwg.mxu0
        %951 = vmatpush.xpose.msra.mxu0 0.0
        %952 = vmatpush.xpose.msra.mxu0 0.0
        %953 = vmatpush.xpose.msra.mxu0 0.0
        %954 = vmatpush.xpose.msra.mxu0 0.0
        %955 = vmatpush.xpose.msra.mxu0 0.0
        %956 = vmatpush.xpose.msra.mxu0 0.0
        %957 = vmatpush.xpose.msra.mxu0 0.0
        %958 = vmatpush.xpose.msra.mxu0 0.0
        %959 = vmatpush.xpose.msra.mxu0 0.0
        %960 = vmatpush.xpose.msra.mxu0 0.0
        %961 = vmatpush.xpose.msra.mxu0 0.0
        %962 = vmatpush.xpose.msra.mxu0 0.0
        %963 = vmatpush.xpose.msra.mxu0 0.0
        %964 = vmatpush.xpose.msra.mxu0 0.0
        %965 = vmatpush.xpose.msra.mxu0 0.0
        %v966 = vand.u32 %v923, 4294901760
        %v967 = vsub.f32 %v923, %v966
        %v968 = vand.u32 %v967, 4294901760
        %v969 = vsub.f32 %v967, %v968
        %v970 = vand.u32 %v969, 4294901760
        %971 = vmatpush.xpose.msra.mxu0 %v970
        %v972 = vand.u32 %v920, 4294901760
        %973 = vmatmul.f32.gmra.mxu0 %v972
        %v974 = vpop.f32.mrf.mxu0
        %v975 = vadd.f32 %v949, %v974
        %976 = vdwg.mxu0
        %977 = vmatpush.xpose.msra.mxu0 0.0
        %978 = vmatpush.xpose.msra.mxu0 0.0
        %979 = vmatpush.xpose.msra.mxu0 0.0
        %980 = vmatpush.xpose.msra.mxu0 0.0
        %981 = vmatpush.xpose.msra.mxu0 0.0
        %982 = vmatpush.xpose.msra.mxu0 0.0
        %983 = vmatpush.xpose.msra.mxu0 0.0
        %984 = vmatpush.xpose.msra.mxu0 0.0
        %985 = vmatpush.xpose.msra.mxu0 0.0
        %986 = vmatpush.xpose.msra.mxu0 0.0
        %987 = vmatpush.xpose.msra.mxu0 0.0
        %988 = vmatpush.xpose.msra.mxu0 0.0
        %989 = vmatpush.xpose.msra.mxu0 0.0
        %990 = vmatpush.xpose.msra.mxu0 0.0
        %991 = vmatpush.xpose.msra.mxu0 0.0
        %v992 = vand.u32 %v923, 4294901760
        %v993 = vsub.f32 %v923, %v992
        %994 = vmatpush.xpose.msra.mxu0 %v993
        %v995 = vand.u32 %v920, 4294901760
        %v996 = vsub.f32 %v920, %v995
        %997 = vmatmul.f32.gmra.mxu0 %v996
        %v998 = vpop.f32.mrf.mxu0
        %v999 = vadd.f32 %v975, %v998
        %1000 = vdwg.mxu0
        %1001 = vmatpush.xpose.msra.mxu0 0.0
        %1002 = vmatpush.xpose.msra.mxu0 0.0
        %1003 = vmatpush.xpose.msra.mxu0 0.0
        %1004 = vmatpush.xpose.msra.mxu0 0.0
        %1005 = vmatpush.xpose.msra.mxu0 0.0
        %1006 = vmatpush.xpose.msra.mxu0 0.0
        %1007 = vmatpush.xpose.msra.mxu0 0.0
        %1008 = vmatpush.xpose.msra.mxu0 0.0
        %1009 = vmatpush.xpose.msra.mxu0 0.0
        %1010 = vmatpush.xpose.msra.mxu0 0.0
        %1011 = vmatpush.xpose.msra.mxu0 0.0
        %1012 = vmatpush.xpose.msra.mxu0 0.0
        %1013 = vmatpush.xpose.msra.mxu0 0.0
        %1014 = vmatpush.xpose.msra.mxu0 0.0
        %1015 = vmatpush.xpose.msra.mxu0 0.0
        %v1016 = vand.u32 %v923, 4294901760
        %1017 = vmatpush.xpose.msra.mxu0 %v1016
        %v1018 = vand.u32 %v920, 4294901760
        %v1019 = vsub.f32 %v920, %v1018
        %v1020 = vand.u32 %v1019, 4294901760
        %1021 = vmatmul.f32.gmra.mxu0 %v1020
        %v1022 = vpop.f32.mrf.mxu0
        %v1023 = vadd.f32 %v999, %v1022
        %1024 = vdwg.mxu0
        %1025 = vmatpush.xpose.msra.mxu0 0.0
        %1026 = vmatpush.xpose.msra.mxu0 0.0
        %1027 = vmatpush.xpose.msra.mxu0 0.0
        %1028 = vmatpush.xpose.msra.mxu0 0.0
        %1029 = vmatpush.xpose.msra.mxu0 0.0
        %1030 = vmatpush.xpose.msra.mxu0 0.0
        %1031 = vmatpush.xpose.msra.mxu0 0.0
        %1032 = vmatpush.xpose.msra.mxu0 0.0
        %1033 = vmatpush.xpose.msra.mxu0 0.0
        %1034 = vmatpush.xpose.msra.mxu0 0.0
        %1035 = vmatpush.xpose.msra.mxu0 0.0
        %1036 = vmatpush.xpose.msra.mxu0 0.0
        %1037 = vmatpush.xpose.msra.mxu0 0.0
        %1038 = vmatpush.xpose.msra.mxu0 0.0
        %1039 = vmatpush.xpose.msra.mxu0 0.0
        %v1040 = vand.u32 %v923, 4294901760
        %v1041 = vsub.f32 %v923, %v1040
        %v1042 = vand.u32 %v1041, 4294901760
        %1043 = vmatpush.xpose.msra.mxu0 %v1042
        %v1044 = vand.u32 %v920, 4294901760
        %1045 = vmatmul.f32.gmra.mxu0 %v1044
        %v1046 = vpop.f32.mrf.mxu0
        %v1047 = vadd.f32 %v1023, %v1046
        %1048 = vdwg.mxu0
        %1049 = vmatpush.xpose.msra.mxu0 0.0
        %1050 = vmatpush.xpose.msra.mxu0 0.0
        %1051 = vmatpush.xpose.msra.mxu0 0.0
        %1052 = vmatpush.xpose.msra.mxu0 0.0
        %1053 = vmatpush.xpose.msra.mxu0 0.0
        %1054 = vmatpush.xpose.msra.mxu0 0.0
        %1055 = vmatpush.xpose.msra.mxu0 0.0
        %1056 = vmatpush.xpose.msra.mxu0 0.0
        %1057 = vmatpush.xpose.msra.mxu0 0.0
        %1058 = vmatpush.xpose.msra.mxu0 0.0
        %1059 = vmatpush.xpose.msra.mxu0 0.0
        %1060 = vmatpush.xpose.msra.mxu0 0.0
        %1061 = vmatpush.xpose.msra.mxu0 0.0
        %1062 = vmatpush.xpose.msra.mxu0 0.0
        %1063 = vmatpush.xpose.msra.mxu0 0.0
        %v1064 = vand.u32 %v923, 4294901760
        %1065 = vmatpush.xpose.msra.mxu0 %v1064
        %v1066 = vand.u32 %v920, 4294901760
        %1067 = vmatmul.f32.gmra.mxu0 %v1066
        %v1068 = vpop.f32.mrf.mxu0
        %v1069 = vadd.f32 %v1047, %v1068
        %1070 = vdwg.mxu0
        %v1071 = vsel %vm918, %v1069, -inf
        %1072 = vmax.xlane.f32.xlu0 %v1071
        %v1073 = vpop.xlane.xlu0 %1072
        %v1074 = vsub.f32 %v1069, %v1073
        %v1075 = vmul.f32 %v1074, 1.442695
        %v1076 = vpow.pop %v1075
        %v1077 = vsel %vm918, %v1076, 0.0
        %1078 = vadd.xlane.f32.xlu0 %v1077
        %v1079 = vpop.xlane.xlu0 %1078
        %v1080 = vrcp.pop %v1079
        %v1081 = vmul.f32 %v1079, %v1080
        %v1082 = vsub.f32 1.0, %v1081
        %v1083 = vmul.f32 %v1080, %v1082
        %v1084 = vadd.f32 %v1080, %v1083
        %vm1085 = vweird.f32 %v1079
        %vm1086 = vweird.f32 %v1080
        %vm1087 = vmor %vm1085, %vm1086
        %v1088 = vsel %vm1087, %v1080, %v1084
        %v1089 = vand.u32 2147483647, %v1079
        %vm1090 = vcmp.eq.f32.partialorder %v1089, 8.507059e+37
        %v1091 = vand.u32 %v1079, 2147483648
        %v1092 = vor.u32 1.1754944e-38, %v1091
        %v1093 = vsel %vm1090, %v1092, %v1088
        %v1094 = vmul.f32 1.0, %v1093
        %v1095 = vmul.f32 %v1076, %v1094
        %v1097 = vsel %vm918, %v1095, 0
        %1099 = vmatpush.msra.mxu0 0.0
        %1100 = vmatpush.msra.mxu0 0.0
        %1101 = vmatpush.msra.mxu0 0.0
        %1102 = vmatpush.msra.mxu0 0.0
        %1103 = vmatpush.msra.mxu0 0.0
        %1104 = vmatpush.msra.mxu0 0.0
        %1105 = vmatpush.msra.mxu0 0.0
        %1106 = vmatpush.msra.mxu0 0.0
        %1107 = vmatpush.msra.mxu0 0.0
        %1108 = vmatpush.msra.mxu0 0.0
        %1109 = vmatpush.msra.mxu0 0.0
        %1110 = vmatpush.msra.mxu0 0.0
        %1111 = vmatpush.msra.mxu0 0.0
        %1112 = vmatpush.msra.mxu0 0.0
        %1113 = vmatpush.msra.mxu0 0.0
        %v1114 = vand.u32 %v916, 4294901760
        %1115 = vmatpush.msra.mxu0 %v1114
        %v1116 = vand.u32 %v1097, 4294901760
        %v1117 = vsub.f32 %v1097, %v1116
        %v1118 = vand.u32 %v1117, 4294901760
        %v1119 = vsub.f32 %v1117, %v1118
        %v1120 = vand.u32 %v1119, 4294901760
        %1121 = vmatmul.f32.gmra.mxu0 %v1120
        %v1122 = vpop.f32.mrf.mxu0
        %v1123 = vadd.f32 0.0, %v1122
        %1124 = vdwg.mxu0
        %1125 = vmatpush.msra.mxu0 0.0
        %1126 = vmatpush.msra.mxu0 0.0
        %1127 = vmatpush.msra.mxu0 0.0
        %1128 = vmatpush.msra.mxu0 0.0
        %1129 = vmatpush.msra.mxu0 0.0
        %1130 = vmatpush.msra.mxu0 0.0
        %1131 = vmatpush.msra.mxu0 0.0
        %1132 = vmatpush.msra.mxu0 0.0
        %1133 = vmatpush.msra.mxu0 0.0
        %1134 = vmatpush.msra.mxu0 0.0
        %1135 = vmatpush.msra.mxu0 0.0
        %1136 = vmatpush.msra.mxu0 0.0
        %1137 = vmatpush.msra.mxu0 0.0
        %1138 = vmatpush.msra.mxu0 0.0
        %1139 = vmatpush.msra.mxu0 0.0
        %v1140 = vand.u32 %v916, 4294901760
        %v1141 = vsub.f32 %v916, %v1140
        %v1142 = vand.u32 %v1141, 4294901760
        %v1143 = vsub.f32 %v1141, %v1142
        %v1144 = vand.u32 %v1143, 4294901760
        %1145 = vmatpush.msra.mxu0 %v1144
        %v1146 = vand.u32 %v1097, 4294901760
        %1147 = vmatmul.f32.gmra.mxu0 %v1146
        %v1148 = vpop.f32.mrf.mxu0
        %v1149 = vadd.f32 %v1123, %v1148
        %1150 = vdwg.mxu0
        %1151 = vmatpush.msra.mxu0 0.0
        %1152 = vmatpush.msra.mxu0 0.0
        %1153 = vmatpush.msra.mxu0 0.0
        %1154 = vmatpush.msra.mxu0 0.0
        %1155 = vmatpush.msra.mxu0 0.0
        %1156 = vmatpush.msra.mxu0 0.0
        %1157 = vmatpush.msra.mxu0 0.0
        %1158 = vmatpush.msra.mxu0 0.0
        %1159 = vmatpush.msra.mxu0 0.0
        %1160 = vmatpush.msra.mxu0 0.0
        %1161 = vmatpush.msra.mxu0 0.0
        %1162 = vmatpush.msra.mxu0 0.0
        %1163 = vmatpush.msra.mxu0 0.0
        %1164 = vmatpush.msra.mxu0 0.0
        %1165 = vmatpush.msra.mxu0 0.0
        %v1166 = vand.u32 %v916, 4294901760
        %v1167 = vsub.f32 %v916, %v1166
        %1168 = vmatpush.msra.mxu0 %v1167
        %v1169 = vand.u32 %v1097, 4294901760
        %v1170 = vsub.f32 %v1097, %v1169
        %1171 = vmatmul.f32.gmra.mxu0 %v1170
        %v1172 = vpop.f32.mrf.mxu0
        %v1173 = vadd.f32 %v1149, %v1172
        %1174 = vdwg.mxu0
        %1175 = vmatpush.msra.mxu0 0.0
        %1176 = vmatpush.msra.mxu0 0.0
        %1177 = vmatpush.msra.mxu0 0.0
        %1178 = vmatpush.msra.mxu0 0.0
        %1179 = vmatpush.msra.mxu0 0.0
        %1180 = vmatpush.msra.mxu0 0.0
        %1181 = vmatpush.msra.mxu0 0.0
        %1182 = vmatpush.msra.mxu0 0.0
        %1183 = vmatpush.msra.mxu0 0.0
        %1184 = vmatpush.msra.mxu0 0.0
        %1185 = vmatpush.msra.mxu0 0.0
        %1186 = vmatpush.msra.mxu0 0.0
        %1187 = vmatpush.msra.mxu0 0.0
        %1188 = vmatpush.msra.mxu0 0.0
        %1189 = vmatpush.msra.mxu0 0.0
        %v1190 = vand.u32 %v916, 4294901760
        %1191 = vmatpush.msra.mxu0 %v1190
        %v1192 = vand.u32 %v1097, 4294901760
        %v1193 = vsub.f32 %v1097, %v1192
        %v1194 = vand.u32 %v1193, 4294901760
        %1195 = vmatmul.f32.gmra.mxu0 %v1194
        %v1196 = vpop.f32.mrf.mxu0
        %v1197 = vadd.f32 %v1173, %v1196
        %1198 = vdwg.mxu0
        %1199 = vmatpush.msra.mxu0 0.0
        %1200 = vmatpush.msra.mxu0 0.0
        %1201 = vmatpush.msra.mxu0 0.0
        %1202 = vmatpush.msra.mxu0 0.0
        %1203 = vmatpush.msra.mxu0 0.0
        %1204 = vmatpush.msra.mxu0 0.0
        %1205 = vmatpush.msra.mxu0 0.0
        %1206 = vmatpush.msra.mxu0 0.0
        %1207 = vmatpush.msra.mxu0 0.0
        %1208 = vmatpush.msra.mxu0 0.0
        %1209 = vmatpush.msra.mxu0 0.0
        %1210 = vmatpush.msra.mxu0 0.0
        %1211 = vmatpush.msra.mxu0 0.0
        %1212 = vmatpush.msra.mxu0 0.0
        %1213 = vmatpush.msra.mxu0 0.0
        %v1214 = vand.u32 %v916, 4294901760
        %v1215 = vsub.f32 %v916, %v1214
        %v1216 = vand.u32 %v1215, 4294901760
        %1217 = vmatpush.msra.mxu0 %v1216
        %v1218 = vand.u32 %v1097, 4294901760
        %1219 = vmatmul.f32.gmra.mxu0 %v1218
        %v1220 = vpop.f32.mrf.mxu0
        %v1221 = vadd.f32 %v1197, %v1220
        %1222 = vdwg.mxu0
        %1223 = vmatpush.msra.mxu0 0.0
        %1224 = vmatpush.msra.mxu0 0.0
        %1225 = vmatpush.msra.mxu0 0.0
        %1226 = vmatpush.msra.mxu0 0.0
        %1227 = vmatpush.msra.mxu0 0.0
        %1228 = vmatpush.msra.mxu0 0.0
        %1229 = vmatpush.msra.mxu0 0.0
        %1230 = vmatpush.msra.mxu0 0.0
        %1231 = vmatpush.msra.mxu0 0.0
        %1232 = vmatpush.msra.mxu0 0.0
        %1233 = vmatpush.msra.mxu0 0.0
        %1234 = vmatpush.msra.mxu0 0.0
        %1235 = vmatpush.msra.mxu0 0.0
        %1236 = vmatpush.msra.mxu0 0.0
        %1237 = vmatpush.msra.mxu0 0.0
        %v1238 = vand.u32 %v916, 4294901760
        %1239 = vmatpush.msra.mxu0 %v1238
        %v1240 = vand.u32 %v1097, 4294901760
        %1241 = vmatmul.f32.gmra.mxu0 %v1240
        %v1242 = vpop.f32.mrf.mxu0
        %v1243 = vadd.f32 %v1221, %v1242
        %1244 = vdwg.mxu0
        %v1245 = vld [vmem:[%s335] sm:$0xff]
        %v1246 = vld [vmem:[#allocation2] sm:$0xff]
        %v1248 = vsel %vm918, %v1243, 0
        %1250 = vmatpush.msra.mxu0 0.0
        %1251 = vmatpush.msra.mxu0 0.0
        %1252 = vmatpush.msra.mxu0 0.0
        %1253 = vmatpush.msra.mxu0 0.0
        %1254 = vmatpush.msra.mxu0 0.0
        %1255 = vmatpush.msra.mxu0 0.0
        %1256 = vmatpush.msra.mxu0 0.0
        %1257 = vmatpush.msra.mxu0 0.0
        %1258 = vmatpush.msra.mxu0 0.0
        %1259 = vmatpush.msra.mxu0 0.0
        %1260 = vmatpush.msra.mxu0 0.0
        %1261 = vmatpush.msra.mxu0 0.0
        %1262 = vmatpush.msra.mxu0 0.0
        %1263 = vmatpush.msra.mxu0 0.0
        %1264 = vmatpush.msra.mxu0 0.0
        %v1265 = vand.u32 %v1245, 4294901760
        %1266 = vmatpush.msra.mxu0 %v1265
        %v1267 = vand.u32 %v1248, 4294901760
        %v1268 = vsub.f32 %v1248, %v1267
        %v1269 = vand.u32 %v1268, 4294901760
        %v1270 = vsub.f32 %v1268, %v1269
        %v1271 = vand.u32 %v1270, 4294901760
        %1272 = vmatmul.f32.gmra.mxu0 %v1271
        %v1273 = vpop.f32.mrf.mxu0
        %v1274 = vadd.f32 0.0, %v1273
        %1275 = vdwg.mxu0
        %1276 = vmatpush.msra.mxu0 0.0
        %1277 = vmatpush.msra.mxu0 0.0
        %1278 = vmatpush.msra.mxu0 0.0
        %1279 = vmatpush.msra.mxu0 0.0
        %1280 = vmatpush.msra.mxu0 0.0
        %1281 = vmatpush.msra.mxu0 0.0
        %1282 = vmatpush.msra.mxu0 0.0
        %1283 = vmatpush.msra.mxu0 0.0
        %1284 = vmatpush.msra.mxu0 0.0
        %1285 = vmatpush.msra.mxu0 0.0
        %1286 = vmatpush.msra.mxu0 0.0
        %1287 = vmatpush.msra.mxu0 0.0
        %1288 = vmatpush.msra.mxu0 0.0
        %1289 = vmatpush.msra.mxu0 0.0
        %1290 = vmatpush.msra.mxu0 0.0
        %v1291 = vand.u32 %v1245, 4294901760
        %v1292 = vsub.f32 %v1245, %v1291
        %v1293 = vand.u32 %v1292, 4294901760
        %v1294 = vsub.f32 %v1292, %v1293
        %v1295 = vand.u32 %v1294, 4294901760
        %1296 = vmatpush.msra.mxu0 %v1295
        %v1297 = vand.u32 %v1248, 4294901760
        %1298 = vmatmul.f32.gmra.mxu0 %v1297
        %v1299 = vpop.f32.mrf.mxu0
        %v1300 = vadd.f32 %v1274, %v1299
        %1301 = vdwg.mxu0
        %1302 = vmatpush.msra.mxu0 0.0
        %1303 = vmatpush.msra.mxu0 0.0
        %1304 = vmatpush.msra.mxu0 0.0
        %1305 = vmatpush.msra.mxu0 0.0
        %1306 = vmatpush.msra.mxu0 0.0
        %1307 = vmatpush.msra.mxu0 0.0
        %1308 = vmatpush.msra.mxu0 0.0
        %1309 = vmatpush.msra.mxu0 0.0
        %1310 = vmatpush.msra.mxu0 0.0
        %1311 = vmatpush.msra.mxu0 0.0
        %1312 = vmatpush.msra.mxu0 0.0
        %1313 = vmatpush.msra.mxu0 0.0
        %1314 = vmatpush.msra.mxu0 0.0
        %1315 = vmatpush.msra.mxu0 0.0
        %1316 = vmatpush.msra.mxu0 0.0
        %v1317 = vand.u32 %v1245, 4294901760
        %v1318 = vsub.f32 %v1245, %v1317
        %1319 = vmatpush.msra.mxu0 %v1318
        %v1320 = vand.u32 %v1248, 4294901760
        %v1321 = vsub.f32 %v1248, %v1320
        %1322 = vmatmul.f32.gmra.mxu0 %v1321
        %v1323 = vpop.f32.mrf.mxu0
        %v1324 = vadd.f32 %v1300, %v1323
        %1325 = vdwg.mxu0
        %1326 = vmatpush.msra.mxu0 0.0
        %1327 = vmatpush.msra.mxu0 0.0
        %1328 = vmatpush.msra.mxu0 0.0
        %1329 = vmatpush.msra.mxu0 0.0
        %1330 = vmatpush.msra.mxu0 0.0
        %1331 = vmatpush.msra.mxu0 0.0
        %1332 = vmatpush.msra.mxu0 0.0
        %1333 = vmatpush.msra.mxu0 0.0
        %1334 = vmatpush.msra.mxu0 0.0
        %1335 = vmatpush.msra.mxu0 0.0
        %1336 = vmatpush.msra.mxu0 0.0
        %1337 = vmatpush.msra.mxu0 0.0
        %1338 = vmatpush.msra.mxu0 0.0
        %1339 = vmatpush.msra.mxu0 0.0
        %1340 = vmatpush.msra.mxu0 0.0
        %v1341 = vand.u32 %v1245, 4294901760
        %1342 = vmatpush.msra.mxu0 %v1341
        %v1343 = vand.u32 %v1248, 4294901760
        %v1344 = vsub.f32 %v1248, %v1343
        %v1345 = vand.u32 %v1344, 4294901760
        %1346 = vmatmul.f32.gmra.mxu0 %v1345
        %v1347 = vpop.f32.mrf.mxu0
        %v1348 = vadd.f32 %v1324, %v1347
        %1349 = vdwg.mxu0
        %1350 = vmatpush.msra.mxu0 0.0
        %1351 = vmatpush.msra.mxu0 0.0
        %1352 = vmatpush.msra.mxu0 0.0
        %1353 = vmatpush.msra.mxu0 0.0
        %1354 = vmatpush.msra.mxu0 0.0
        %1355 = vmatpush.msra.mxu0 0.0
        %1356 = vmatpush.msra.mxu0 0.0
        %1357 = vmatpush.msra.mxu0 0.0
        %1358 = vmatpush.msra.mxu0 0.0
        %1359 = vmatpush.msra.mxu0 0.0
        %1360 = vmatpush.msra.mxu0 0.0
        %1361 = vmatpush.msra.mxu0 0.0
        %1362 = vmatpush.msra.mxu0 0.0
        %1363 = vmatpush.msra.mxu0 0.0
        %1364 = vmatpush.msra.mxu0 0.0
        %v1365 = vand.u32 %v1245, 4294901760
        %v1366 = vsub.f32 %v1245, %v1365
        %v1367 = vand.u32 %v1366, 4294901760
        %1368 = vmatpush.msra.mxu0 %v1367
        %v1369 = vand.u32 %v1248, 4294901760
        %1370 = vmatmul.f32.gmra.mxu0 %v1369
        %v1371 = vpop.f32.mrf.mxu0
        %v1372 = vadd.f32 %v1348, %v1371
        %1373 = vdwg.mxu0
        %1374 = vmatpush.msra.mxu0 0.0
        %1375 = vmatpush.msra.mxu0 0.0
        %1376 = vmatpush.msra.mxu0 0.0
        %1377 = vmatpush.msra.mxu0 0.0
        %1378 = vmatpush.msra.mxu0 0.0
        %1379 = vmatpush.msra.mxu0 0.0
        %1380 = vmatpush.msra.mxu0 0.0
        %1381 = vmatpush.msra.mxu0 0.0
        %1382 = vmatpush.msra.mxu0 0.0
        %1383 = vmatpush.msra.mxu0 0.0
        %1384 = vmatpush.msra.mxu0 0.0
        %1385 = vmatpush.msra.mxu0 0.0
        %1386 = vmatpush.msra.mxu0 0.0
        %1387 = vmatpush.msra.mxu0 0.0
        %1388 = vmatpush.msra.mxu0 0.0
        %v1389 = vand.u32 %v1245, 4294901760
        %1390 = vmatpush.msra.mxu0 %v1389
        %v1391 = vand.u32 %v1248, 4294901760
        %1392 = vmatmul.f32.gmra.mxu0 %v1391
        %v1393 = vpop.f32.mrf.mxu0
        %v1394 = vadd.f32 %v1372, %v1393
        %1395 = vdwg.mxu0
        %v1396 = vadd.f32 %v1246, %v1394
        %1397 = vst.msk [vmem:[#allocation2] sm:$0xff] %vm351, %v1396
        %p1398 = scmp.eq.s32.totalorder %s25, 3
        // Predicated region
        $region49: #{tpu_custom_call.1} parent=43 // pred_check
          %p1399 = pneg %p1398
        $region50: #{tpu_custom_call.1} parent=43 // pred_check_branch
          %1401 = sbr.rel (%p1399) target = $region52
        $region51: #{tpu_custom_call.1} parent=43 // pred_region
          %v1402 = vld [vmem:[#allocation2] sm:$0xff]
          %1403 = vst.msk [vmem:[%s312] sm:$0xff] %vm351, %v1402
        $region52: #{tpu_custom_call.1} parent=43 // pred_fallthru
          _
        %s1404 = sand.u32 %s191, 1
        %s1405 = scalar_lea.sflag [#allocation4], %s1404
        %s1406 = sand.u32 %s191, 1
        %s1407 = smul.addr %s1406, 8
        %s1408 = scalar_lea.vmem [#allocation3], %s1407
        // Predicated region
        $region53: #{tpu_custom_call.1} parent=43 // pred_check
          %p1409 = pneg %p201
        $region54: #{tpu_custom_call.1} parent=43 // pred_check_branch
          %1411 = sbr.rel (%p1409) target = $region56
        $region55: #{tpu_custom_call.1} parent=43 // pred_region
          %1413 = vsyncadd %s1405, 0
          %s1414 = smul.addr %s24, 8
          %s1415 = scalar_lea.hbm %s6, %s1414
          %s1417 = sshll.u32 %s1408, 4
          %s1418 = int_to_ptr.vmem [resolvable:$true] %s1417
          %s1419 = sshll.u32 %s1415, 4
          %s1420 = int_to_ptr.hbm [resolvable:$true] %s1419
          %1422 = dma.vmem_to_hbm [thread:$0]  %s1418, 128, %s1420, %s1405
        $region56: #{tpu_custom_call.1} parent=43 // pred_fallthru
          _
      $region44: #{tpu_custom_call.1} parent=5 // pred_fallthru
        _
      %p1423 = scmp.le.s32.totalorder 2, %s15
      // Predicated region
      $region57: #{tpu_custom_call.1} parent=5 // pred_check
        %p1424 = pneg %p1423
      $region58: #{tpu_custom_call.1} parent=5 // pred_check_branch
        %1426 = sbr.rel (%p1424) target = $region60
      $region59: #{tpu_custom_call.1} parent=5 // pred_region
        %s1427 = ssub.s32 %s15, 2
        // Predicated region
        $region61: #{tpu_custom_call.1} parent=59 // pred_check
          %p1428 = pneg %p207
        $region62: #{tpu_custom_call.1} parent=59 // pred_check_branch
          %1430 = sbr.rel (%p1428) target = $region64
        $region63: #{tpu_custom_call.1} parent=59 // pred_region
          %s1431 = sand.u32 %s192, 1
          %s1432 = scalar_lea.sflag [#allocation4], %s1431
          %s1433 = sand.u32 %s192, 1
          %s1434 = smul.addr %s1433, 8
          %s1435 = scalar_lea.vmem [#allocation3], %s1434
          %1437 = dma.done %s1432, 128
        $region64: #{tpu_custom_call.1} parent=59 // pred_fallthru
          _
      $region60: #{tpu_custom_call.1} parent=5 // pred_fallthru
        _
    $region6: #{tpu_custom_call.1} parent=1 // loop_footer
      %s19 = sadd.s32 1, %s15
    $region7: #{tpu_custom_call.1} parent=1 // loop_footer_branch
      %14 = sbr.rel target = $region3
    $region8: #{tpu_custom_call.1} parent=1 // loop_exit
      _
    %1438 = vsyncpa [#allocation4], 1
    %s1439 = scalar_lea.sflag [#allocation4], 1
    %1440 = vsyncpa %s1439, 1

</llo_original>
